<compile_context>
chip_gen: v5e
topology: v5e:2x2
jax: 0.10.0
libtpu: 0.0.40
codegen_flags: <defaults>
</compile_context>

<pallas_src>
import numpy as np
import jax
import jax.numpy as jnp
from jax.experimental import pallas as pl
from jax.experimental.pallas import tpu as pltpu


# ----------------------------- Kernel A ------------------------------------
# 1x1 conv (no bias) as a per-batch matmul, plus per-batch partial sum of
# squares (reduced to the global L2 norm of v in the wrapper).
def conv1_norm_kernel(feat_ref, w1_ref, v_ref, ssq_ref):
    bf16 = jnp.bfloat16
    # feat_ref block: (1, C, HW); w1_ref: (mid, C)
    v = jnp.dot(w1_ref[...].astype(bf16), feat_ref[0].astype(bf16),
                preferred_element_type=jnp.float32)                      # (mid, HW)
    v_ref[0] = v
    ssq_ref[...] = jnp.sum(v * v, axis=(0, 1), keepdims=True).reshape(1, 1, 1)


# ----------------------------- Kernel B ------------------------------------
# Per batch-block of Bb rows: normalize v, lin1(q), MCB (count-sketch +
# circular conv as a circulant matmul), attention head, and the
# attention-weighted spatial reduction (softmax over a size-1 channel dim is
# identically 1.0 -> the reduction is just the spatial sum of v_norm).
def mcb_attention_kernel(inv_norm_ref, v_rs_ref, x_ref,
                         wlin_ref, blin_ref, pq_ref, pv_ref,
                         wa1_ref, ba1_ref, wa2t_ref, ba2_ref,
                         out_ref, logits_ref, circ_ref):
    bb, HW, mid = v_rs_ref.shape
    d = pq_ref.shape[1]
    hid = wa1_ref.shape[1]
    bf16 = jnp.bfloat16

    inv_norm = inv_norm_ref[0]                               # scalar from SMEM
    v_norm = v_rs_ref[...] * inv_norm                        # (bb, HW, mid) f32

    # img_att_x: Softmax(dim=1) acts on a size-1 channel dim -> weights are
    # exactly 1.0, so the module's weighted sum is the plain spatial sum.
    out_ref[:, 0, :] = jnp.sum(v_norm, axis=1)               # (bb, mid)

    # ------------- attention-logits path (debug output only) ---------------
    # lin1 (dropout == identity in eval mode)
    q = jnp.dot(x_ref[:, 0, :].astype(bf16), wlin_ref[...].astype(bf16),
                preferred_element_type=jnp.float32) + blin_ref[...]      # (bb, mid)

    # MCB: count-sketch both modalities.
    sq = jnp.dot(q.astype(bf16), pq_ref[...].astype(bf16),
                 preferred_element_type=jnp.float32)                     # (bb, d)
    v2 = v_norm.reshape(bb * HW, mid)
    sv = jnp.dot(v2.astype(bf16), pv_ref[...].astype(bf16),
                 preferred_element_type=jnp.float32)                     # (bb*HW, d)

    # Circulant(s) circ[b, m, k] = sq[b, (k - m) mod d]: row m is sq rolled by
    # m, built as a static lane-slice of the doubled vector [sq | sq]. This is
    # pure lane-shuffle work (no rbasis tensor, no O(d^3) VPU loop).
    sq2 = jnp.concatenate([sq, sq], axis=-1)                             # (bb, 2d)
    for m in range(d):                                                   # static unroll
        circ_ref[:, m, :] = sq2[:, d - m:2 * d - m]

    # Per-row circular convolution == sv @ circulant(sq), batched on the MXU.
    att_mcb = jnp.einsum(
        "bhm,bmk->bhk",
        sv.reshape(bb, HW, d).astype(bf16),
        circ_ref[...].astype(bf16),
        preferred_element_type=jnp.float32)                              # (bb, HW, d)

    # attention head: Conv2d(d, 512, 1) -> ReLU -> Conv2d(512, 1, 1)
    h1 = jnp.maximum(
        jnp.dot(att_mcb.reshape(bb * HW, d).astype(bf16),
                wa1_ref[...].astype(bf16),
                preferred_element_type=jnp.float32) + ba1_ref[...], 0.0)  # (bb*HW, hid)

    # Second conv has a single output channel: do it on the VPU/XLU
    # (broadcast multiply + lane reduction) instead of an N=1 MXU matmul.
    h2 = jnp.sum(h1.reshape(bb, HW, hid) * wa2t_ref[...], axis=-1) + ba2_ref[...]
    logits_ref[:, 0, :] = h2                                              # (bb, HW)


# ------------------------------ Wrapper -------------------------------------
def _pick_block_b(B, max_b=8):
    bb = max(1, min(B, max_b))
    while B % bb:
        bb -= 1
    return bb


def mcb_attention_forward(x, feat, params, max_block_b=8):
    """Returns (img_att_x, attention_logits). The module's return value is img_att_x."""
    B, C, H, W = feat.shape
    HW = H * W
    mid = params["w1"].shape[0]
    Q = x.shape[1]
    d = params["pq"].shape[1]
    hid = params["wa1"].shape[1]

    feat_f = feat.reshape(B, C, HW)

    v_nchw, ssq = pl.pallas_call(
        conv1_norm_kernel,
        grid=(B,),
        in_specs=[
            pl.BlockSpec((1, C, HW), lambda b: (b, 0, 0)),
            pl.BlockSpec((mid, C), lambda b: (0, 0)),
        ],
        out_specs=[
            pl.BlockSpec((1, mid, HW), lambda b: (b, 0, 0)),
            pl.BlockSpec((1, 1, 1), lambda b: (b, 0, 0)),
        ],
        out_shape=[
            jax.ShapeDtypeStruct((B, mid, HW), jnp.float32),
            jax.ShapeDtypeStruct((B, 1, 1), jnp.float32),
        ],
        compiler_params=pltpu.CompilerParams(dimension_semantics=("parallel",)),
    )(feat_f, params["w1"])

    # torch.norm(v, p=2) (global Frobenius norm); .detach() irrelevant for fwd.
    # TODO(synk): no epsilon (faithful to the module); an all-zero feat -> inf.
    inv_norm = (1.0 / jnp.sqrt(jnp.sum(ssq))).reshape(1)

    # raw row-major reshape of the NCHW conv output == torch .view(-1, H*W, mid)
    v_rs = v_nchw.reshape(B, HW, mid)
    x3 = x.reshape(B, 1, Q)
    wa2t = params["wa2"].T                       # (1, hid): lane-dense for VPU path

    bb = _pick_block_b(B, max_block_b)

    out3, logits = pl.pallas_call(
        mcb_attention_kernel,
        grid=(B // bb,),
        in_specs=[
            pl.BlockSpec(memory_space=pltpu.MemorySpace.SMEM),     # inv_norm (1,)
            pl.BlockSpec((bb, HW, mid), lambda i: (i, 0, 0)),      # v_rs
            pl.BlockSpec((bb, 1, Q), lambda i: (i, 0, 0)),         # x
            pl.BlockSpec((Q, mid), lambda i: (0, 0)),              # lin1 weight^T
            pl.BlockSpec((1, mid), lambda i: (0, 0)),              # lin1 bias
            pl.BlockSpec((mid, d), lambda i: (0, 0)),              # count-sketch (q)
            pl.BlockSpec((mid, d), lambda i: (0, 0)),              # count-sketch (v)
            pl.BlockSpec((d, hid), lambda i: (0, 0)),              # attn conv1 weight^T
            pl.BlockSpec((1, hid), lambda i: (0, 0)),              # attn conv1 bias
            pl.BlockSpec((1, hid), lambda i: (0, 0)),              # attn conv2 weight (row)
            pl.BlockSpec((1, 1), lambda i: (0, 0)),                # attn conv2 bias
        ],
        out_specs=[
            pl.BlockSpec((bb, 1, mid), lambda i: (i, 0, 0)),
            pl.BlockSpec((bb, 1, HW), lambda i: (i, 0, 0)),        # lane-dense logits
        ],
        out_shape=[
            jax.ShapeDtypeStruct((B, 1, mid), jnp.float32),
            jax.ShapeDtypeStruct((B, 1, HW), jnp.float32),
        ],
        scratch_shapes=[pltpu.VMEM((bb, d, d), jnp.float32)],      # circulant(s)
        compiler_params=pltpu.CompilerParams(dimension_semantics=("parallel",)),
    )(inv_norm, v_rs, x3, params["wlin"], params["blin"], params["pq"],
      params["pv"], params["wa1"], params["ba1"], wa2t, params["ba2"])

    return out3[:, 0, :], logits[:, 0, :]


# --------------------------- Parameter setup --------------------------------
def init_params(key, ques_feat_size, feat_size, mid_features, mcb_dim, attn_hidden=512):
    ks = jax.random.split(key, 12)
    f32 = jnp.float32
    w1 = jax.random.normal(ks[0], (mid_features, feat_size), f32) / np.sqrt(feat_size)
    wlin = jax.random.normal(ks[1], (ques_feat_size, mid_features), f32) / np.sqrt(ques_feat_size)
    blin = 0.05 * jax.random.normal(ks[2], (1, mid_features), f32)

    # MCBPolling count-sketch params (hash indices + random signs), 2 modalities
    h0 = jax.random.randint(ks[3], (mid_features,), 0, mcb_dim)
    h1 = jax.random.randint(ks[4], (mid_features,), 0, mcb_dim)
    s0 = jnp.where(jax.random.bernoulli(ks[5], 0.5, (mid_features,)), 1.0, -1.0).astype(f32)
    s1 = jnp.where(jax.random.bernoulli(ks[6], 0.5, (mid_features,)), 1.0, -1.0).astype(f32)
    pq = jax.nn.one_hot(h0, mcb_dim, dtype=f32) * s0[:, None]
    pv = jax.nn.one_hot(h1, mcb_dim, dtype=f32) * s1[:, None]

    wa1 = jax.random.normal(ks[7], (mcb_dim, attn_hidden), f32) / np.sqrt(mcb_dim)
    ba1 = 0.05 * jax.random.normal(ks[8], (1, attn_hidden), f32)
    wa2 = jax.random.normal(ks[9], (attn_hidden, 1), f32) / np.sqrt(attn_hidden)
    ba2 = 0.05 * jax.random.normal(ks[10], (1, 1), f32)

    return dict(w1=w1, wlin=wlin, blin=blin, pq=pq, pv=pv,
                wa1=wa1, ba1=ba1, wa2=wa2, ba2=ba2)


# --------------------------- Pure-JAX reference ------------------------------
def reference_forward(x, feat, params):
    with jax.default_matmul_precision("highest"):
        B, C, H, W = feat.shape
        mid = params["w1"].shape[0]
        v_nchw = jnp.einsum("oc,bchw->bohw", params["w1"], feat)
        norm = jnp.sqrt(jnp.sum(v_nchw ** 2))
        v_rs = v_nchw.reshape(B, H * W, mid) / norm              # torch .view semantics
        q = x @ params["wlin"] + params["blin"]                  # (B, mid)
        sq = q @ params["pq"]                                    # (B, d)
        sv = v_rs @ params["pv"]                                 # (B, HW, d)
        att_mcb = jnp.real(jnp.fft.ifft(jnp.fft.fft(sq, axis=-1)[:, None, :]
                                        * jnp.fft.fft(sv, axis=-1), axis=-1))
        h1 = jnp.maximum(att_mcb @ params["wa1"] + params["ba1"], 0.0)
        h2 = h1 @ params["wa2"] + params["ba2"]                  # (B, HW, 1)
        att = jax.nn.softmax(h2, axis=-1)                        # size-1 channel dim -> ones
        out = jnp.sum(v_rs * att, axis=1)                        # (B, mid)
    return out, h2


if __name__ == "__main__":
    B, C, H, W = 2, 8, 8, 8            # feat: (B, feat_size, H, W)
    QF, MID, D = 16, 32, 16            # ques_feat_size, mid_features, mcb_dim

    key = jax.random.PRNGKey(0)
    kx, kf, kp = jax.random.split(key, 3)
    x = jax.random.normal(kx, (B, QF), jnp.float32)
    feat = jax.random.normal(kf, (B, C, H, W), jnp.float32)
    params = init_params(kp, QF, C, MID, D)

    fwd = jax.jit(lambda x, feat: mcb_attention_forward(x, feat, params))
    out, logits = fwd(x, feat)
    jax.block_until_ready((out, logits))

    ref_out, ref_logits = reference_forward(x, feat, params)
    np.testing.assert_allclose(np.asarray(out), np.asarray(ref_out),
                               rtol=3e-2, atol=5e-3)
    np.testing.assert_allclose(np.asarray(logits), np.asarray(ref_logits[:, :, 0]),
                               rtol=3e-2, atol=5e-3)
    print("KERNEL_OK")
</pallas_src>

<mosaic_0001>
module attributes {stable_mosaic.version = 11 : i64} {
  func.func @conv1_norm_kernel(%arg0: i32, %arg1: memref<1x8x64xf32, #tpu.memory_space<vmem>>, %arg2: memref<32x8xf32, #tpu.memory_space<vmem>>, %arg3: memref<1x32x64xf32, #tpu.memory_space<vmem>>, %arg4: memref<1x1x1xf32, #tpu.memory_space<vmem>>) attributes {dimension_semantics = [#tpu.dimension_semantics<parallel>], iteration_bounds = array<i64: 2>, scalar_prefetch = 0 : i64, scratch_operands = 0 : i64, tpu.core_type = #tpu.core_type<tc>, window_params = [{transform_indices = @transform_0, window_bounds = array<i64: 1, 8, 64>}, {pipeline_mode = #tpu.pipeline_mode<synchronous>, transform_indices = @transform_1, window_bounds = array<i64: 32, 8>}, {transform_indices = @transform_2, window_bounds = array<i64: 1, 32, 64>}, {transform_indices = @transform_3, window_bounds = array<i64: 1, 1, 1>}]} {
    %c0 = arith.constant 0 : index
    %c0_0 = arith.constant 0 : index
    %0 = vector.load %arg2[%c0, %c0_0] : memref<32x8xf32, #tpu.memory_space<vmem>>, vector<32x8xf32>
    %1 = arith.truncf %0 : vector<32x8xf32> to vector<32x8xbf16>
    %c0_1 = arith.constant 0 : index
    %c0_2 = arith.constant 0 : index
    %c0_3 = arith.constant 0 : index
    %2 = vector.load %arg1[%c0_1, %c0_2, %c0_3] : memref<1x8x64xf32, #tpu.memory_space<vmem>>, vector<1x8x64xf32>
    %3 = vector.shape_cast %2 : vector<1x8x64xf32> to vector<8x64xf32>
    %4 = arith.truncf %3 : vector<8x64xf32> to vector<8x64xbf16>
    %cst = arith.constant dense<0.000000e+00> : vector<32x64xf32>
    %5 = tpu.matmul %1, %4, %cst {dimension_numbers = #tpu.dot_dimension_numbers<[1], [0], [0], [1], [0, 0, 1, 1], [], []>} : vector<32x8xbf16>, vector<8x64xbf16>, vector<32x64xf32> -> vector<32x64xf32>
    %c0_4 = arith.constant 0 : index
    %c0_5 = arith.constant 0 : index
    %c0_6 = arith.constant 0 : index
    %6 = vector.load %arg3[%c0_4, %c0_5, %c0_6] : memref<1x32x64xf32, #tpu.memory_space<vmem>>, vector<1x32x64xf32>
    %7 = vector.shape_cast %6 : vector<1x32x64xf32> to vector<32x64xf32>
    %8 = vector.shape_cast %5 : vector<32x64xf32> to vector<1x32x64xf32>
    tpu.vector_store %arg3[%c0_4, %c0_5, %c0_6], %8 {strides = array<i32>} : memref<1x32x64xf32, #tpu.memory_space<vmem>>, vector<1x32x64xf32>,
    %9 = arith.mulf %5, %5 : vector<32x64xf32>
    %10 = vector.shape_cast %9 : vector<32x64xf32> to vector<1x32x64xf32>
    %cst_7 = arith.constant dense<0.000000e+00> : vector<1xf32>
    %11 = vector.multi_reduction <add>, %10, %cst_7 [1, 2] : vector<1x32x64xf32> to vector<1xf32>
    %12 = vector.shape_cast %11 : vector<1xf32> to vector<1x1x1xf32>
    %13 = vector.extract %12[0, 0, 0] : f32 from vector<1x1x1xf32>
    %14 = vector.broadcast %13 : f32 to vector<1x1xf32>
    %15 = vector.shape_cast %14 : vector<1x1xf32> to vector<1x1x1xf32>
    %c0_8 = arith.constant 0 : index
    %c0_9 = arith.constant 0 : index
    %c0_10 = arith.constant 0 : index
    %16 = vector.load %arg4[%c0_8, %c0_9, %c0_10] : memref<1x1x1xf32, #tpu.memory_space<vmem>>, vector<1x1x1xf32>
    tpu.vector_store %arg4[%c0_8, %c0_9, %c0_10], %15 {strides = array<i32>} : memref<1x1x1xf32, #tpu.memory_space<vmem>>, vector<1x1x1xf32>,
    return
  }
  func.func @transform_0(%arg0: i32) -> (i32, i32, i32) {
    %c0_i32 = arith.constant 0 : i32
    %c0_i32_0 = arith.constant 0 : i32
    %c0_i32_1 = arith.constant 0 : i32
    return %arg0, %c0_i32, %c0_i32_0 : i32, i32, i32
  }
  func.func @transform_1(%arg0: i32) -> (i32, i32) {
    %c0_i32 = arith.constant 0 : i32
    %c0_i32_0 = arith.constant 0 : i32
    %c0_i32_1 = arith.constant 0 : i32
    return %c0_i32, %c0_i32_0 : i32, i32
  }
  func.func @transform_2(%arg0: i32) -> (i32, i32, i32) {
    %c0_i32 = arith.constant 0 : i32
    %c0_i32_0 = arith.constant 0 : i32
    %c0_i32_1 = arith.constant 0 : i32
    return %arg0, %c0_i32, %c0_i32_0 : i32, i32, i32
  }
  func.func @transform_3(%arg0: i32) -> (i32, i32, i32) {
    %c0_i32 = arith.constant 0 : i32
    %c0_i32_0 = arith.constant 0 : i32
    %c0_i32_1 = arith.constant 0 : i32
    return %arg0, %c0_i32, %c0_i32_0 : i32, i32, i32
  }
}

module attributes {stable_mosaic.version = 11 : i64} {
  func.func @mcb_attention_kernel(%arg0: i32, %arg1: memref<1xf32, #tpu.memory_space<smem>>, %arg2: memref<2x64x32xf32, #tpu.memory_space<vmem>>, %arg3: memref<2x1x16xf32, #tpu.memory_space<vmem>>, %arg4: memref<16x32xf32, #tpu.memory_space<vmem>>, %arg5: memref<1x32xf32, #tpu.memory_space<vmem>>, %arg6: memref<32x16xf32, #tpu.memory_space<vmem>>, %arg7: memref<32x16xf32, #tpu.memory_space<vmem>>, %arg8: memref<16x512xf32, #tpu.memory_space<vmem>>, %arg9: memref<1x512xf32, #tpu.memory_space<vmem>>, %arg10: memref<1x512xf32, #tpu.memory_space<vmem>>, %arg11: memref<1x1xf32, #tpu.memory_space<vmem>>, %arg12: memref<2x1x32xf32, #tpu.memory_space<vmem>>, %arg13: memref<2x1x64xf32, #tpu.memory_space<vmem>>, %arg14: memref<2x16x16xf32, #tpu.memory_space<vmem>>) attributes {dimension_semantics = [#tpu.dimension_semantics<parallel>], iteration_bounds = array<i64: 1>, scalar_prefetch = 0 : i64, scratch_operands = 1 : i64, tpu.core_type = #tpu.core_type<tc>, window_params = [{transform_indices = @transform_0, window_bounds = array<i64: 1>}, {transform_indices = @transform_1, window_bounds = array<i64: 2, 64, 32>}, {transform_indices = @transform_2, window_bounds = array<i64: 2, 1, 16>}, {pipeline_mode = #tpu.pipeline_mode<synchronous>, transform_indices = @transform_3, window_bounds = array<i64: 16, 32>}, {pipeline_mode = #tpu.pipeline_mode<synchronous>, transform_indices = @transform_4, window_bounds = array<i64: 1, 32>}, {pipeline_mode = #tpu.pipeline_mode<synchronous>, transform_indices = @transform_5, window_bounds = array<i64: 32, 16>}, {pipeline_mode = #tpu.pipeline_mode<synchronous>, transform_indices = @transform_6, window_bounds = array<i64: 32, 16>}, {pipeline_mode = #tpu.pipeline_mode<synchronous>, transform_indices = @transform_7, window_bounds = array<i64: 16, 512>}, {pipeline_mode = #tpu.pipeline_mode<synchronous>, transform_indices = @transform_8, window_bounds = array<i64: 1, 512>}, {pipeline_mode = #tpu.pipeline_mode<synchronous>, transform_indices = @transform_9, window_bounds = array<i64: 1, 512>}, {pipeline_mode = #tpu.pipeline_mode<synchronous>, transform_indices = @transform_10, window_bounds = array<i64: 1, 1>}, {transform_indices = @transform_11, window_bounds = array<i64: 2, 1, 32>}, {transform_indices = @transform_12, window_bounds = array<i64: 2, 1, 64>}]} {
    %c0 = arith.constant 0 : index
    %0 = memref.load %arg1[%c0] : memref<1xf32, #tpu.memory_space<smem>>
    %c0_0 = arith.constant 0 : index
    %c0_1 = arith.constant 0 : index
    %c0_2 = arith.constant 0 : index
    %1 = vector.load %arg2[%c0_0, %c0_1, %c0_2] : memref<2x64x32xf32, #tpu.memory_space<vmem>>, vector<2x64x32xf32>
    %2 = vector.broadcast %0 : f32 to vector<2x64x32xf32>
    %3 = arith.mulf %1, %2 : vector<2x64x32xf32>
    %cst = arith.constant dense<0.000000e+00> : vector<2x32xf32>
    %4 = vector.multi_reduction <add>, %3, %cst [1] : vector<2x64x32xf32> to vector<2x32xf32>
    %c0_3 = arith.constant 0 : index
    %c0_4 = arith.constant 0 : index
    %c0_5 = arith.constant 0 : index
    %5 = vector.load %arg12[%c0_3, %c0_4, %c0_5] : memref<2x1x32xf32, #tpu.memory_space<vmem>>, vector<2x1x32xf32>
    %6 = vector.shape_cast %5 : vector<2x1x32xf32> to vector<2x32xf32>
    %7 = vector.shape_cast %4 : vector<2x32xf32> to vector<2x1x32xf32>
    tpu.vector_store %arg12[%c0_3, %c0_4, %c0_5], %7 {strides = array<i32>} : memref<2x1x32xf32, #tpu.memory_space<vmem>>, vector<2x1x32xf32>,
    %c0_6 = arith.constant 0 : index
    %c0_7 = arith.constant 0 : index
    %c0_8 = arith.constant 0 : index
    %8 = vector.load %arg3[%c0_6, %c0_7, %c0_8] : memref<2x1x16xf32, #tpu.memory_space<vmem>>, vector<2x1x16xf32>
    %9 = vector.shape_cast %8 : vector<2x1x16xf32> to vector<2x16xf32>
    %10 = arith.truncf %9 : vector<2x16xf32> to vector<2x16xbf16>
    %c0_9 = arith.constant 0 : index
    %c0_10 = arith.constant 0 : index
    %11 = vector.load %arg4[%c0_9, %c0_10] : memref<16x32xf32, #tpu.memory_space<vmem>>, vector<16x32xf32>
    %12 = arith.truncf %11 : vector<16x32xf32> to vector<16x32xbf16>
    %cst_11 = arith.constant dense<0.000000e+00> : vector<2x32xf32>
    %13 = tpu.matmul %10, %12, %cst_11 {dimension_numbers = #tpu.dot_dimension_numbers<[1], [0], [0], [1], [0, 0, 1, 1], [], []>} : vector<2x16xbf16>, vector<16x32xbf16>, vector<2x32xf32> -> vector<2x32xf32>
    %c0_12 = arith.constant 0 : index
    %c0_13 = arith.constant 0 : index
    %14 = vector.load %arg5[%c0_12, %c0_13] : memref<1x32xf32, #tpu.memory_space<vmem>>, vector<1x32xf32>
    %15 = vector.broadcast %14 : vector<1x32xf32> to vector<2x32xf32>
    %16 = arith.addf %13, %15 : vector<2x32xf32>
    %17 = arith.truncf %16 : vector<2x32xf32> to vector<2x32xbf16>
    %c0_14 = arith.constant 0 : index
    %c0_15 = arith.constant 0 : index
    %18 = vector.load %arg6[%c0_14, %c0_15] : memref<32x16xf32, #tpu.memory_space<vmem>>, vector<32x16xf32>
    %19 = arith.truncf %18 : vector<32x16xf32> to vector<32x16xbf16>
    %cst_16 = arith.constant dense<0.000000e+00> : vector<2x16xf32>
    %20 = tpu.matmul %17, %19, %cst_16 {dimension_numbers = #tpu.dot_dimension_numbers<[1], [0], [0], [1], [0, 0, 1, 1], [], []>} : vector<2x32xbf16>, vector<32x16xbf16>, vector<2x16xf32> -> vector<2x16xf32>
    %21 = vector.shape_cast %3 : vector<2x64x32xf32> to vector<128x32xf32>
    %22 = arith.truncf %21 : vector<128x32xf32> to vector<128x32xbf16>
    %c0_17 = arith.constant 0 : index
    %c0_18 = arith.constant 0 : index
    %23 = vector.load %arg7[%c0_17, %c0_18] : memref<32x16xf32, #tpu.memory_space<vmem>>, vector<32x16xf32>
    %24 = arith.truncf %23 : vector<32x16xf32> to vector<32x16xbf16>
    %cst_19 = arith.constant dense<0.000000e+00> : vector<128x16xf32>
    %25 = tpu.matmul %22, %24, %cst_19 {dimension_numbers = #tpu.dot_dimension_numbers<[1], [0], [0], [1], [0, 0, 1, 1], [], []>} : vector<128x32xbf16>, vector<32x16xbf16>, vector<128x16xf32> -> vector<128x16xf32>
    %26 = tpu.concatenate %20, %20 in 1 : vector<2x16xf32>, vector<2x16xf32> -> vector<2x32xf32>
    %27 = vector.extract_strided_slice %26 {offsets = [0, 16], sizes = [2, 16], strides = [1, 1]} : vector<2x32xf32> to vector<2x16xf32>
    %c0_20 = arith.constant 0 : index
    %c0_21 = arith.constant 0 : index
    %c0_22 = arith.constant 0 : index
    %28 = vector.load %arg14[%c0_20, %c0_21, %c0_22] : memref<2x16x16xf32, #tpu.memory_space<vmem>>, vector<2x1x16xf32>
    %29 = vector.shape_cast %28 : vector<2x1x16xf32> to vector<2x16xf32>
    %30 = vector.shape_cast %27 : vector<2x16xf32> to vector<2x1x16xf32>
    tpu.vector_store %arg14[%c0_20, %c0_21, %c0_22], %30 {strides = array<i32>} : memref<2x16x16xf32, #tpu.memory_space<vmem>>, vector<2x1x16xf32>,
    %31 = vector.extract_strided_slice %26 {offsets = [0, 15], sizes = [2, 16], strides = [1, 1]} : vector<2x32xf32> to vector<2x16xf32>
    %c0_23 = arith.constant 0 : index
    %c1 = arith.constant 1 : index
    %c0_24 = arith.constant 0 : index
    %32 = vector.load %arg14[%c0_23, %c1, %c0_24] : memref<2x16x16xf32, #tpu.memory_space<vmem>>, vector<2x1x16xf32>
    %33 = vector.shape_cast %32 : vector<2x1x16xf32> to vector<2x16xf32>
    %34 = vector.shape_cast %31 : vector<2x16xf32> to vector<2x1x16xf32>
    tpu.vector_store %arg14[%c0_23, %c1, %c0_24], %34 {strides = array<i32>} : memref<2x16x16xf32, #tpu.memory_space<vmem>>, vector<2x1x16xf32>,
    %35 = vector.extract_strided_slice %26 {offsets = [0, 14], sizes = [2, 16], strides = [1, 1]} : vector<2x32xf32> to vector<2x16xf32>
    %c0_25 = arith.constant 0 : index
    %c2 = arith.constant 2 : index
    %c0_26 = arith.constant 0 : index
    %36 = vector.load %arg14[%c0_25, %c2, %c0_26] : memref<2x16x16xf32, #tpu.memory_space<vmem>>, vector<2x1x16xf32>
    %37 = vector.shape_cast %36 : vector<2x1x16xf32> to vector<2x16xf32>
    %38 = vector.shape_cast %35 : vector<2x16xf32> to vector<2x1x16xf32>
    tpu.vector_store %arg14[%c0_25, %c2, %c0_26], %38 {strides = array<i32>} : memref<2x16x16xf32, #tpu.memory_space<vmem>>, vector<2x1x16xf32>,
    %39 = vector.extract_strided_slice %26 {offsets = [0, 13], sizes = [2, 16], strides = [1, 1]} : vector<2x32xf32> to vector<2x16xf32>
    %c0_27 = arith.constant 0 : index
    %c3 = arith.constant 3 : index
    %c0_28 = arith.constant 0 : index
    %40 = vector.load %arg14[%c0_27, %c3, %c0_28] : memref<2x16x16xf32, #tpu.memory_space<vmem>>, vector<2x1x16xf32>
    %41 = vector.shape_cast %40 : vector<2x1x16xf32> to vector<2x16xf32>
    %42 = vector.shape_cast %39 : vector<2x16xf32> to vector<2x1x16xf32>
    tpu.vector_store %arg14[%c0_27, %c3, %c0_28], %42 {strides = array<i32>} : memref<2x16x16xf32, #tpu.memory_space<vmem>>, vector<2x1x16xf32>,
    %43 = vector.extract_strided_slice %26 {offsets = [0, 12], sizes = [2, 16], strides = [1, 1]} : vector<2x32xf32> to vector<2x16xf32>
    %c0_29 = arith.constant 0 : index
    %c4 = arith.constant 4 : index
    %c0_30 = arith.constant 0 : index
    %44 = vector.load %arg14[%c0_29, %c4, %c0_30] : memref<2x16x16xf32, #tpu.memory_space<vmem>>, vector<2x1x16xf32>
    %45 = vector.shape_cast %44 : vector<2x1x16xf32> to vector<2x16xf32>
    %46 = vector.shape_cast %43 : vector<2x16xf32> to vector<2x1x16xf32>
    tpu.vector_store %arg14[%c0_29, %c4, %c0_30], %46 {strides = array<i32>} : memref<2x16x16xf32, #tpu.memory_space<vmem>>, vector<2x1x16xf32>,
    %47 = vector.extract_strided_slice %26 {offsets = [0, 11], sizes = [2, 16], strides = [1, 1]} : vector<2x32xf32> to vector<2x16xf32>
    %c0_31 = arith.constant 0 : index
    %c5 = arith.constant 5 : index
    %c0_32 = arith.constant 0 : index
    %48 = vector.load %arg14[%c0_31, %c5, %c0_32] : memref<2x16x16xf32, #tpu.memory_space<vmem>>, vector<2x1x16xf32>
    %49 = vector.shape_cast %48 : vector<2x1x16xf32> to vector<2x16xf32>
    %50 = vector.shape_cast %47 : vector<2x16xf32> to vector<2x1x16xf32>
    tpu.vector_store %arg14[%c0_31, %c5, %c0_32], %50 {strides = array<i32>} : memref<2x16x16xf32, #tpu.memory_space<vmem>>, vector<2x1x16xf32>,
    %51 = vector.extract_strided_slice %26 {offsets = [0, 10], sizes = [2, 16], strides = [1, 1]} : vector<2x32xf32> to vector<2x16xf32>
    %c0_33 = arith.constant 0 : index
    %c6 = arith.constant 6 : index
    %c0_34 = arith.constant 0 : index
    %52 = vector.load %arg14[%c0_33, %c6, %c0_34] : memref<2x16x16xf32, #tpu.memory_space<vmem>>, vector<2x1x16xf32>
    %53 = vector.shape_cast %52 : vector<2x1x16xf32> to vector<2x16xf32>
    %54 = vector.shape_cast %51 : vector<2x16xf32> to vector<2x1x16xf32>
    tpu.vector_store %arg14[%c0_33, %c6, %c0_34], %54 {strides = array<i32>} : memref<2x16x16xf32, #tpu.memory_space<vmem>>, vector<2x1x16xf32>,
    %55 = vector.extract_strided_slice %26 {offsets = [0, 9], sizes = [2, 16], strides = [1, 1]} : vector<2x32xf32> to vector<2x16xf32>
    %c0_35 = arith.constant 0 : index
    %c7 = arith.constant 7 : index
    %c0_36 = arith.constant 0 : index
    %56 = vector.load %arg14[%c0_35, %c7, %c0_36] : memref<2x16x16xf32, #tpu.memory_space<vmem>>, vector<2x1x16xf32>
    %57 = vector.shape_cast %56 : vector<2x1x16xf32> to vector<2x16xf32>
    %58 = vector.shape_cast %55 : vector<2x16xf32> to vector<2x1x16xf32>
    tpu.vector_store %arg14[%c0_35, %c7, %c0_36], %58 {strides = array<i32>} : memref<2x16x16xf32, #tpu.memory_space<vmem>>, vector<2x1x16xf32>,
    %59 = vector.extract_strided_slice %26 {offsets = [0, 8], sizes = [2, 16], strides = [1, 1]} : vector<2x32xf32> to vector<2x16xf32>
    %c0_37 = arith.constant 0 : index
    %c8 = arith.constant 8 : index
    %c0_38 = arith.constant 0 : index
    %60 = vector.load %arg14[%c0_37, %c8, %c0_38] : memref<2x16x16xf32, #tpu.memory_space<vmem>>, vector<2x1x16xf32>
    %61 = vector.shape_cast %60 : vector<2x1x16xf32> to vector<2x16xf32>
    %62 = vector.shape_cast %59 : vector<2x16xf32> to vector<2x1x16xf32>
    tpu.vector_store %arg14[%c0_37, %c8, %c0_38], %62 {strides = array<i32>} : memref<2x16x16xf32, #tpu.memory_space<vmem>>, vector<2x1x16xf32>,
    %63 = vector.extract_strided_slice %26 {offsets = [0, 7], sizes = [2, 16], strides = [1, 1]} : vector<2x32xf32> to vector<2x16xf32>
    %c0_39 = arith.constant 0 : index
    %c9 = arith.constant 9 : index
    %c0_40 = arith.constant 0 : index
    %64 = vector.load %arg14[%c0_39, %c9, %c0_40] : memref<2x16x16xf32, #tpu.memory_space<vmem>>, vector<2x1x16xf32>
    %65 = vector.shape_cast %64 : vector<2x1x16xf32> to vector<2x16xf32>
    %66 = vector.shape_cast %63 : vector<2x16xf32> to vector<2x1x16xf32>
    tpu.vector_store %arg14[%c0_39, %c9, %c0_40], %66 {strides = array<i32>} : memref<2x16x16xf32, #tpu.memory_space<vmem>>, vector<2x1x16xf32>,
    %67 = vector.extract_strided_slice %26 {offsets = [0, 6], sizes = [2, 16], strides = [1, 1]} : vector<2x32xf32> to vector<2x16xf32>
    %c0_41 = arith.constant 0 : index
    %c10 = arith.constant 10 : index
    %c0_42 = arith.constant 0 : index
    %68 = vector.load %arg14[%c0_41, %c10, %c0_42] : memref<2x16x16xf32, #tpu.memory_space<vmem>>, vector<2x1x16xf32>
    %69 = vector.shape_cast %68 : vector<2x1x16xf32> to vector<2x16xf32>
    %70 = vector.shape_cast %67 : vector<2x16xf32> to vector<2x1x16xf32>
    tpu.vector_store %arg14[%c0_41, %c10, %c0_42], %70 {strides = array<i32>} : memref<2x16x16xf32, #tpu.memory_space<vmem>>, vector<2x1x16xf32>,
    %71 = vector.extract_strided_slice %26 {offsets = [0, 5], sizes = [2, 16], strides = [1, 1]} : vector<2x32xf32> to vector<2x16xf32>
    %c0_43 = arith.constant 0 : index
    %c11 = arith.constant 11 : index
    %c0_44 = arith.constant 0 : index
    %72 = vector.load %arg14[%c0_43, %c11, %c0_44] : memref<2x16x16xf32, #tpu.memory_space<vmem>>, vector<2x1x16xf32>
    %73 = vector.shape_cast %72 : vector<2x1x16xf32> to vector<2x16xf32>
    %74 = vector.shape_cast %71 : vector<2x16xf32> to vector<2x1x16xf32>
    tpu.vector_store %arg14[%c0_43, %c11, %c0_44], %74 {strides = array<i32>} : memref<2x16x16xf32, #tpu.memory_space<vmem>>, vector<2x1x16xf32>,
    %75 = vector.extract_strided_slice %26 {offsets = [0, 4], sizes = [2, 16], strides = [1, 1]} : vector<2x32xf32> to vector<2x16xf32>
    %c0_45 = arith.constant 0 : index
    %c12 = arith.constant 12 : index
    %c0_46 = arith.constant 0 : index
    %76 = vector.load %arg14[%c0_45, %c12, %c0_46] : memref<2x16x16xf32, #tpu.memory_space<vmem>>, vector<2x1x16xf32>
    %77 = vector.shape_cast %76 : vector<2x1x16xf32> to vector<2x16xf32>
    %78 = vector.shape_cast %75 : vector<2x16xf32> to vector<2x1x16xf32>
    tpu.vector_store %arg14[%c0_45, %c12, %c0_46], %78 {strides = array<i32>} : memref<2x16x16xf32, #tpu.memory_space<vmem>>, vector<2x1x16xf32>,
    %79 = vector.extract_strided_slice %26 {offsets = [0, 3], sizes = [2, 16], strides = [1, 1]} : vector<2x32xf32> to vector<2x16xf32>
    %c0_47 = arith.constant 0 : index
    %c13 = arith.constant 13 : index
    %c0_48 = arith.constant 0 : index
    %80 = vector.load %arg14[%c0_47, %c13, %c0_48] : memref<2x16x16xf32, #tpu.memory_space<vmem>>, vector<2x1x16xf32>
    %81 = vector.shape_cast %80 : vector<2x1x16xf32> to vector<2x16xf32>
    %82 = vector.shape_cast %79 : vector<2x16xf32> to vector<2x1x16xf32>
    tpu.vector_store %arg14[%c0_47, %c13, %c0_48], %82 {strides = array<i32>} : memref<2x16x16xf32, #tpu.memory_space<vmem>>, vector<2x1x16xf32>,
    %83 = vector.extract_strided_slice %26 {offsets = [0, 2], sizes = [2, 16], strides = [1, 1]} : vector<2x32xf32> to vector<2x16xf32>
    %c0_49 = arith.constant 0 : index
    %c14 = arith.constant 14 : index
    %c0_50 = arith.constant 0 : index
    %84 = vector.load %arg14[%c0_49, %c14, %c0_50] : memref<2x16x16xf32, #tpu.memory_space<vmem>>, vector<2x1x16xf32>
    %85 = vector.shape_cast %84 : vector<2x1x16xf32> to vector<2x16xf32>
    %86 = vector.shape_cast %83 : vector<2x16xf32> to vector<2x1x16xf32>
    tpu.vector_store %arg14[%c0_49, %c14, %c0_50], %86 {strides = array<i32>} : memref<2x16x16xf32, #tpu.memory_space<vmem>>, vector<2x1x16xf32>,
    %87 = vector.extract_strided_slice %26 {offsets = [0, 1], sizes = [2, 16], strides = [1, 1]} : vector<2x32xf32> to vector<2x16xf32>
    %c0_51 = arith.constant 0 : index
    %c15 = arith.constant 15 : index
    %c0_52 = arith.constant 0 : index
    %88 = vector.load %arg14[%c0_51, %c15, %c0_52] : memref<2x16x16xf32, #tpu.memory_space<vmem>>, vector<2x1x16xf32>
    %89 = vector.shape_cast %88 : vector<2x1x16xf32> to vector<2x16xf32>
    %90 = vector.shape_cast %87 : vector<2x16xf32> to vector<2x1x16xf32>
    tpu.vector_store %arg14[%c0_51, %c15, %c0_52], %90 {strides = array<i32>} : memref<2x16x16xf32, #tpu.memory_space<vmem>>, vector<2x1x16xf32>,
    %91 = vector.shape_cast %25 : vector<128x16xf32> to vector<2x64x16xf32>
    %92 = arith.truncf %91 : vector<2x64x16xf32> to vector<2x64x16xbf16>
    %c0_53 = arith.constant 0 : index
    %c0_54 = arith.constant 0 : index
    %c0_55 = arith.constant 0 : index
    %93 = vector.load %arg14[%c0_53, %c0_54, %c0_55] : memref<2x16x16xf32, #tpu.memory_space<vmem>>, vector<2x16x16xf32>
    %94 = arith.truncf %93 : vector<2x16x16xf32> to vector<2x16x16xbf16>
    "tpu.trace_start"() <{level = 10 : i32, message = "bhm,bmk->bhk"}> : () -> ()
    %cst_56 = arith.constant dense<0.000000e+00> : vector<2x64x16xf32>
    %95 = tpu.matmul %92, %94, %cst_56 {dimension_numbers = #tpu.dot_dimension_numbers<[2], [1], [1], [2], [0, 0, 0, 1, 1, 2], [0], [0]>} : vector<2x64x16xbf16>, vector<2x16x16xbf16>, vector<2x64x16xf32> -> vector<2x64x16xf32>
    "tpu.trace_stop"() : () -> ()
    %96 = vector.shape_cast %95 : vector<2x64x16xf32> to vector<128x16xf32>
    %97 = arith.truncf %96 : vector<128x16xf32> to vector<128x16xbf16>
    %c0_57 = arith.constant 0 : index
    %c0_58 = arith.constant 0 : index
    %98 = vector.load %arg8[%c0_57, %c0_58] : memref<16x512xf32, #tpu.memory_space<vmem>>, vector<16x512xf32>
    %99 = arith.truncf %98 : vector<16x512xf32> to vector<16x512xbf16>
    %cst_59 = arith.constant dense<0.000000e+00> : vector<128x512xf32>
    %100 = tpu.matmul %97, %99, %cst_59 {dimension_numbers = #tpu.dot_dimension_numbers<[1], [0], [0], [1], [0, 0, 1, 1], [], []>} : vector<128x16xbf16>, vector<16x512xbf16>, vector<128x512xf32> -> vector<128x512xf32>
    %c0_60 = arith.constant 0 : index
    %c0_61 = arith.constant 0 : index
    %101 = vector.load %arg9[%c0_60, %c0_61] : memref<1x512xf32, #tpu.memory_space<vmem>>, vector<1x512xf32>
    %102 = vector.broadcast %101 : vector<1x512xf32> to vector<128x512xf32>
    %103 = arith.addf %100, %102 : vector<128x512xf32>
    %cst_62 = arith.constant 0.000000e+00 : f32
    %104 = vector.broadcast %cst_62 : f32 to vector<128x512xf32>
    %105 = arith.maximumf %103, %104 : vector<128x512xf32>
    %106 = vector.shape_cast %105 : vector<128x512xf32> to vector<2x64x512xf32>
    %c0_63 = arith.constant 0 : index
    %c0_64 = arith.constant 0 : index
    %107 = vector.load %arg10[%c0_63, %c0_64] : memref<1x512xf32, #tpu.memory_space<vmem>>, vector<1x512xf32>
    %108 = vector.shape_cast %107 : vector<1x512xf32> to vector<1x1x512xf32>
    %109 = vector.broadcast %108 : vector<1x1x512xf32> to vector<2x64x512xf32>
    %110 = arith.mulf %106, %109 : vector<2x64x512xf32>
    %cst_65 = arith.constant dense<0.000000e+00> : vector<2x64xf32>
    %111 = vector.multi_reduction <add>, %110, %cst_65 [2] : vector<2x64x512xf32> to vector<2x64xf32>
    %c0_66 = arith.constant 0 : index
    %c0_67 = arith.constant 0 : index
    %112 = vector.load %arg11[%c0_66, %c0_67] : memref<1x1xf32, #tpu.memory_space<vmem>>, vector<1x1xf32>
    %113 = vector.broadcast %112 : vector<1x1xf32> to vector<2x64xf32>
    %114 = arith.addf %111, %113 : vector<2x64xf32>
    %c0_68 = arith.constant 0 : index
    %c0_69 = arith.constant 0 : index
    %c0_70 = arith.constant 0 : index
    %115 = vector.load %arg13[%c0_68, %c0_69, %c0_70] : memref<2x1x64xf32, #tpu.memory_space<vmem>>, vector<2x1x64xf32>
    %116 = vector.shape_cast %115 : vector<2x1x64xf32> to vector<2x64xf32>
    %117 = vector.shape_cast %114 : vector<2x64xf32> to vector<2x1x64xf32>
    tpu.vector_store %arg13[%c0_68, %c0_69, %c0_70], %117 {strides = array<i32>} : memref<2x1x64xf32, #tpu.memory_space<vmem>>, vector<2x1x64xf32>,
    return
  }
  func.func @transform_0(%arg0: i32) -> i32 {
    %c0_i32 = arith.constant 0 : i32
    %c0_i32_0 = arith.constant 0 : i32
    return %c0_i32 : i32
  }
  func.func @transform_1(%arg0: i32) -> (i32, i32, i32) {
    %c0_i32 = arith.constant 0 : i32
    %c0_i32_0 = arith.constant 0 : i32
    %c0_i32_1 = arith.constant 0 : i32
    return %arg0, %c0_i32, %c0_i32_0 : i32, i32, i32
  }
  func.func @transform_2(%arg0: i32) -> (i32, i32, i32) {
    %c0_i32 = arith.constant 0 : i32
    %c0_i32_0 = arith.constant 0 : i32
    %c0_i32_1 = arith.constant 0 : i32
    return %arg0, %c0_i32, %c0_i32_0 : i32, i32, i32
  }
  func.func @transform_3(%arg0: i32) -> (i32, i32) {
    %c0_i32 = arith.constant 0 : i32
    %c0_i32_0 = arith.constant 0 : i32
    %c0_i32_1 = arith.constant 0 : i32
    return %c0_i32, %c0_i32_0 : i32, i32
  }
  func.func @transform_4(%arg0: i32) -> (i32, i32) {
    %c0_i32 = arith.constant 0 : i32
    %c0_i32_0 = arith.constant 0 : i32
    %c0_i32_1 = arith.constant 0 : i32
    return %c0_i32, %c0_i32_0 : i32, i32
  }
  func.func @transform_5(%arg0: i32) -> (i32, i32) {
    %c0_i32 = arith.constant 0 : i32
    %c0_i32_0 = arith.constant 0 : i32
    %c0_i32_1 = arith.constant 0 : i32
    return %c0_i32, %c0_i32_0 : i32, i32
  }
  func.func @transform_6(%arg0: i32) -> (i32, i32) {
    %c0_i32 = arith.constant 0 : i32
    %c0_i32_0 = arith.constant 0 : i32
    %c0_i32_1 = arith.constant 0 : i32
    return %c0_i32, %c0_i32_0 : i32, i32
  }
  func.func @transform_7(%arg0: i32) -> (i32, i32) {
    %c0_i32 = arith.constant 0 : i32
    %c0_i32_0 = arith.constant 0 : i32
    %c0_i32_1 = arith.constant 0 : i32
    return %c0_i32, %c0_i32_0 : i32, i32
  }
  func.func @transform_8(%arg0: i32) -> (i32, i32) {
    %c0_i32 = arith.constant 0 : i32
    %c0_i32_0 = arith.constant 0 : i32
    %c0_i32_1 = arith.constant 0 : i32
    return %c0_i32, %c0_i32_0 : i32, i32
  }
  func.func @transform_9(%arg0: i32) -> (i32, i32) {
    %c0_i32 = arith.constant 0 : i32
    %c0_i32_0 = arith.constant 0 : i32
    %c0_i32_1 = arith.constant 0 : i32
    return %c0_i32, %c0_i32_0 : i32, i32
  }
  func.func @transform_10(%arg0: i32) -> (i32, i32) {
    %c0_i32 = arith.constant 0 : i32
    %c0_i32_0 = arith.constant 0 : i32
    %c0_i32_1 = arith.constant 0 : i32
    return %c0_i32, %c0_i32_0 : i32, i32
  }
  func.func @transform_11(%arg0: i32) -> (i32, i32, i32) {
    %c0_i32 = arith.constant 0 : i32
    %c0_i32_0 = arith.constant 0 : i32
    %c0_i32_1 = arith.constant 0 : i32
    return %arg0, %c0_i32, %c0_i32_0 : i32, i32, i32
  }
  func.func @transform_12(%arg0: i32) -> (i32, i32, i32) {
    %c0_i32 = arith.constant 0 : i32
    %c0_i32_0 = arith.constant 0 : i32
    %c0_i32_1 = arith.constant 0 : i32
    return %arg0, %c0_i32, %c0_i32_0 : i32, i32, i32
  }
}

</mosaic_0001>

<llo_original>
// kernel: _lambda_.2
$region0: #{_lambda_.2}
  #allocation0 [shape = 'u32[]', space=smem, size = 0x4, offset = 0x4, fixed_abs, tag = 'smem constant byte address 0x4 - core index']
  #allocation1 [shape = 'u32[72,128]{1,0:T(1,128)}', space=vmem, size = 0x9000, scoped, tag = 'internal scratch']
  %s0 = inlined_call_operand.vmem [shape: f32[2,8,64], index: 0, kind: input, shape index: {}]
  %s1 = inlined_call_operand.vmem [shape: f32[32,8], index: 1, kind: input, shape index: {}]
  %s2 = inlined_call_operand.vmem [shape: f32[2,32,64], index: 2, kind: output, shape index: {0}]
  %s3 = inlined_call_operand.vmem [shape: f32[2,1,1], index: 3, kind: output, shape index: {1}]
  %4 = xla_tuple %s2, %s3
  %s5 = sld [smem:[#allocation0]]
  $region49: #{_lambda_.2} parent=0
    _
  %s7 = ssub.s32 1, %s5
  %s8 = scalar_select 0, %s7, %s5
  loop: start=0, step=1, limit=4
  $region2: #{_lambda_.2} parent=0 // loop_pre_header
    _
  $region3: #{_lambda_.2} parent=0 // loop_header
    %s10 = sphi 0, %s14
    %p11 = scmp.ge.s32.totalorder %s10, 4
    %s20 = sphi 0, %s22
    %s23 = sphi 0, %s20
    %s24 = sphi 0, %s23
    %s40 = sphi 0, %s24
    %s44 = sphi 0, %s44
    %s46 = sphi 0, %s44
    %s47 = sphi 0, %s46
    %s61 = sphi 0, %s47
    %s67 = sphi 0, %s69
    %s70 = sphi 0, %s67
    %s71 = sphi 0, %s70
    %s87 = sphi 0, %s71
    %s93 = sphi 0, %s95
    %s96 = sphi 0, %s93
    %s97 = sphi 0, %s96
    %s113 = sphi 0, %s97
  $region4: #{_lambda_.2} parent=0 // loop_header_branch
    %13 = sbr.rel (%p11) target = $region8
  $region5: #{_lambda_.2} parent=0 // loop_body
    %s15 = ssub.s32 %s10, 1
    %s16 = ssub.s32 %s10, 2
    %s17 = sadd.s32 %s10, 1
    %s18 = ssub.s32 %s10, %s17
    %p19 = scmp.eq.s32.totalorder %s18, 0
    %s21 = sadd.s32 %s20, 1
    %s22 = scalar_select %p19, %s20, %s21
    %p25 = pneg %p19
    %p26 = scmp.eq.s32.totalorder %s10, 1
    %p27 = por %p25, %p26
    %p28 = scmp.ne.s32.totalorder %s20, %s23
    %p29 = scmp.eq.s32.totalorder %s10, 0
    %p30 = por %p28, %p29
    %p31 = scmp.ne.s32.totalorder %s20, %s23
    %p32 = scmp.eq.s32.totalorder %s15, 1
    %p33 = por %p31, %p32
    %p34 = scmp.ne.s32.totalorder %s23, %s24
    %p35 = scmp.eq.s32.totalorder %s15, 0
    %p36 = por %p34, %p35
    %p37 = scmp.ne.s32.totalorder %s23, %s24
    %p38 = scmp.eq.s32.totalorder %s16, 1
    %p39 = por %p37, %p38
    %p41 = scmp.ne.s32.totalorder %s24, %s40
    %p42 = scmp.eq.s32.totalorder %s16, 0
    %p43 = por %p41, %p42
    %s45 = sadd.s32 %s44, 1
    %p48 = scmp.eq.s32.totalorder %s10, 1
    %p49 = scmp.ne.s32.totalorder %s44, %s46
    %p50 = scmp.eq.s32.totalorder %s10, 0
    %p51 = por %p49, %p50
    %p52 = scmp.ne.s32.totalorder %s44, %s46
    %p53 = scmp.eq.s32.totalorder %s15, 1
    %p54 = por %p52, %p53
    %p55 = scmp.ne.s32.totalorder %s46, %s47
    %p56 = scmp.eq.s32.totalorder %s15, 0
    %p57 = por %p55, %p56
    %p58 = scmp.ne.s32.totalorder %s46, %s47
    %p59 = scmp.eq.s32.totalorder %s16, 1
    %p60 = por %p58, %p59
    %p62 = scmp.ne.s32.totalorder %s47, %s61
    %p63 = scmp.eq.s32.totalorder %s16, 0
    %p64 = por %p62, %p63
    %s65 = ssub.s32 %s10, %s17
    %p66 = scmp.eq.s32.totalorder %s65, 0
    %s68 = sadd.s32 %s67, 1
    %s69 = scalar_select %p66, %s67, %s68
    %p72 = pneg %p66
    %p73 = scmp.eq.s32.totalorder %s10, 1
    %p74 = por %p72, %p73
    %p75 = scmp.ne.s32.totalorder %s67, %s70
    %p76 = scmp.eq.s32.totalorder %s10, 0
    %p77 = por %p75, %p76
    %p78 = scmp.ne.s32.totalorder %s67, %s70
    %p79 = scmp.eq.s32.totalorder %s15, 1
    %p80 = por %p78, %p79
    %p81 = scmp.ne.s32.totalorder %s70, %s71
    %p82 = scmp.eq.s32.totalorder %s15, 0
    %p83 = por %p81, %p82
    %p84 = scmp.ne.s32.totalorder %s70, %s71
    %p85 = scmp.eq.s32.totalorder %s16, 1
    %p86 = por %p84, %p85
    %p88 = scmp.ne.s32.totalorder %s71, %s87
    %p89 = scmp.eq.s32.totalorder %s16, 0
    %p90 = por %p88, %p89
    %s91 = ssub.s32 %s10, %s17
    %p92 = scmp.eq.s32.totalorder %s91, 0
    %s94 = sadd.s32 %s93, 1
    %s95 = scalar_select %p92, %s93, %s94
    %p98 = pneg %p92
    %p99 = scmp.eq.s32.totalorder %s10, 1
    %p100 = por %p98, %p99
    %p101 = scmp.ne.s32.totalorder %s93, %s96
    %p102 = scmp.eq.s32.totalorder %s10, 0
    %p103 = por %p101, %p102
    %p104 = scmp.ne.s32.totalorder %s93, %s96
    %p105 = scmp.eq.s32.totalorder %s15, 1
    %p106 = por %p104, %p105
    %p107 = scmp.ne.s32.totalorder %s96, %s97
    %p108 = scmp.eq.s32.totalorder %s15, 0
    %p109 = por %p107, %p108
    %p110 = scmp.ne.s32.totalorder %s96, %s97
    %p111 = scmp.eq.s32.totalorder %s16, 1
    %p112 = por %p110, %p111
    %p114 = scmp.ne.s32.totalorder %s97, %s113
    %p115 = scmp.eq.s32.totalorder %s16, 0
    %p116 = por %p114, %p115
    %p117 = scmp.le.s32.totalorder 1, %s10
    %p118 = scmp.lt.s32.totalorder %s10, 3
    %p119 = pnand %p117, %p118
    %p120 = pneg %p119
    // Predicated region
    $region9: #{_lambda_.2} parent=5 // pred_check
      _
    $region10: #{_lambda_.2} parent=5 // pred_check_branch
      %122 = sbr.rel (%p119) target = $region12
    $region11: #{_lambda_.2} parent=5 // pred_region
      %s123 = ssub.s32 %s10, 1
      // Predicated region
      $region13: #{_lambda_.2} parent=11 // pred_check
        %p124 = pneg %p57
      $region14: #{_lambda_.2} parent=11 // pred_check_branch
        %126 = sbr.rel (%p124) target = $region16
      $region15: #{_lambda_.2} parent=11 // pred_region
        _
      $region16: #{_lambda_.2} parent=11 // pred_fallthru
        _
    $region12: #{_lambda_.2} parent=5 // pred_fallthru
      _
    %p127 = scmp.lt.s32.totalorder %s10, 2
    // Predicated region
    $region17: #{_lambda_.2} parent=5 // pred_check
      %p128 = pneg %p127
    $region18: #{_lambda_.2} parent=5 // pred_check_branch
      %130 = sbr.rel (%p128) target = $region20
    $region19: #{_lambda_.2} parent=5 // pred_region
      // Predicated region
      $region21: #{_lambda_.2} parent=19 // pred_check
        %p131 = pneg %p30
      $region22: #{_lambda_.2} parent=19 // pred_check_branch
        %133 = sbr.rel (%p131) target = $region24
      $region23: #{_lambda_.2} parent=19 // pred_region
        %p134 = scmp.lt.s32.totalorder %s10, 1
        %s135 = scalar_select %p134, %s10, 1
        %s136 = smul.addr %s135, 8
        %s137 = scalar_lea.vmem %s0, %s136
      $region24: #{_lambda_.2} parent=19 // pred_fallthru
        _
    $region20: #{_lambda_.2} parent=5 // pred_fallthru
      _
    %p138 = scmp.le.s32.totalorder 1, %s10
    %p139 = scmp.lt.s32.totalorder %s10, 3
    %p140 = pnand %p138, %p139
    %p141 = pneg %p140
    // Predicated region
    $region25: #{_lambda_.2} parent=5 // pred_check
      _
    $region26: #{_lambda_.2} parent=5 // pred_check_branch
      %143 = sbr.rel (%p140) target = $region28
    $region27: #{_lambda_.2} parent=5 // pred_region
      %s144 = ssub.s32 %s10, 1
      %p145 = scmp.lt.s32.totalorder %s15, 1
      %s146 = scalar_select %p145, %s15, 1
      %s147 = smul.addr %s146, 8
      %s148 = scalar_lea.vmem %s0, %s147
      %p149 = pneg %p36
      %p150 = pneg %p33
      %p151 = pneg %p57
      %p152 = pneg %p54
      %p153 = pneg %p83
      %p154 = pneg %p80
      %p155 = scmp.lt.s32.totalorder %s15, 1
      %s156 = scalar_select %p155, %s15, 1
      %s157 = smul.addr %s156, 4
      %s158 = smul.addr %s157, 8
      %s159 = scalar_lea.vmem %s2, %s158
      %p160 = pneg %p109
      %p161 = pneg %p106
      %p162 = scmp.lt.s32.totalorder %s15, 1
      %s163 = scalar_select %p162, %s15, 1
      %s164 = scalar_lea.vmem %s3, %s163
      %p165 = scmp.lt.s32.totalorder %s15, 1
      %s166 = scalar_select %p165, %s15, 1
      %s167 = smul.addr %s166, 8
      %s168 = scalar_lea.vmem %s0, %s167
      %p169 = scmp.lt.s32.totalorder %s15, 1
      %s170 = scalar_select %p169, %s15, 1
      %s171 = smul.addr %s170, 4
      %s172 = smul.addr %s171, 8
      %s173 = scalar_lea.vmem %s2, %s172
      %p174 = scmp.lt.s32.totalorder %s15, 1
      %s175 = scalar_select %p174, %s15, 1
      %s176 = scalar_lea.vmem %s3, %s175
      %v178 = vld [vmem:[%s1] sm:$0xff]
      %v179 = vld [vmem:[%s1 + $0x8] sm:$0xff]
      %v180 = vld [vmem:[%s1 + $0x10] sm:$0xff]
      %v181 = vld [vmem:[%s1 + $0x18] sm:$0xff]
      %v182 = vpack.c.bf16 %v179, %v178
      %v183 = vpack.c.bf16 %v181, %v180
      %v184 = vld [vmem:[%s168] sm:$0xff]
      %v185 = vpack.c.bf16 %v184, %v184
      %vm186 = vcmask 64512
      %v188 = vsel %vm186, %v182, 0
      %v191 = vsel %vm186, %v183, 0
      %vm193 = vcmask 1043456
      %v195 = vsel %vm193, %v185, 0
      %197 = vmatpush.bf16.msra.mxu0 0
      %198 = vmatpush.bf16.msra.mxu0 0
      %199 = vmatpush.bf16.msra.mxu0 0
      %200 = vmatpush.bf16.msra.mxu0 0
      %201 = vmatpush.bf16.msra.mxu0 0
      %202 = vmatpush.bf16.msra.mxu0 0
      %203 = vmatpush.bf16.msra.mxu0 0
      %204 = vmatpush.bf16.msra.mxu0 %v195
      %205 = vmatmul.bf16.gmra.mxu0 %v188
      %v206 = vpop.f32.mrf.mxu0
      %v207 = vadd.f32 0.0, %v206
      %v208 = vpop.f32.mrf.mxu0
      %v209 = vadd.f32 0.0, %v208
      %210 = vmatmul.bf16.gmra.mxu0 %v191
      %v211 = vpop.f32.mrf.mxu0
      %v212 = vadd.f32 0.0, %v211
      %v213 = vpop.f32.mrf.mxu0
      %v214 = vadd.f32 0.0, %v213
      %215 = vdwg.mxu0
      %vm216 = vcmask 523264
      %217 = vst.msk [vmem:[%s173] sm:$0xff] %vm216, %v207
      %218 = vst.msk [vmem:[%s173 + $0x8] sm:$0xff] %vm216, %v209
      %219 = vst.msk [vmem:[%s173 + $0x10] sm:$0xff] %vm216, %v212
      %220 = vst.msk [vmem:[%s173 + $0x18] sm:$0xff] %vm216, %v214
      %v221 = vmul.f32 %v207, %v207
      %v222 = vmul.f32 %v209, %v209
      %v223 = vmul.f32 %v212, %v212
      %v224 = vmul.f32 %v214, %v214
      %v225 = vsel %vm216, %v221, 0.0
      %v226 = vsel %vm216, %v222, 0.0
      %v227 = vadd.f32 %v225, %v226
      %v228 = vsel %vm216, %v223, 0.0
      %v229 = vadd.f32 %v227, %v228
      %v230 = vsel %vm216, %v224, 0.0
      %v231 = vadd.f32 %v229, %v230
      %232 = vadd.xlane.f32.xlu0 %v231
      %v233 = vpop.xlane.xlu0 %232
      %v234 = vrot.slane %v233, 4
      %v235 = vadd.f32 %v233, %v234
      %v236 = vrot.slane %v235, 2
      %v237 = vadd.f32 %v235, %v236
      %v238 = vrot.slane %v237, 1
      %v239 = vadd.f32 %v237, %v238
      %s240 = vtos %v239
      %v241 = vstv %s240
      %vm242 = vcmask 0
      %243 = vst.msk [vmem:[%s176] sm:$0x1] %vm242, %v241
      %p244 = scmp.lt.s32.totalorder %s15, 1
      %s245 = scalar_select %p244, %s15, 1
      %s246 = smul.addr %s245, 4
      %s247 = smul.addr %s246, 8
      %s248 = scalar_lea.vmem %s2, %s247
      %p249 = scmp.lt.s32.totalorder %s15, 1
      %s250 = scalar_select %p249, %s15, 1
      %s251 = scalar_lea.vmem %s3, %s250
      // Predicated region
      $region29: #{_lambda_.2} parent=27 // pred_check
        %p252 = pneg %p80
      $region30: #{_lambda_.2} parent=27 // pred_check_branch
        %254 = sbr.rel (%p252) target = $region32
      $region31: #{_lambda_.2} parent=27 // pred_region
        _
      $region32: #{_lambda_.2} parent=27 // pred_fallthru
        _
      // Predicated region
      $region33: #{_lambda_.2} parent=27 // pred_check
        %p255 = pneg %p106
      $region34: #{_lambda_.2} parent=27 // pred_check_branch
        %257 = sbr.rel (%p255) target = $region36
      $region35: #{_lambda_.2} parent=27 // pred_region
        _
      $region36: #{_lambda_.2} parent=27 // pred_fallthru
        _
    $region28: #{_lambda_.2} parent=5 // pred_fallthru
      _
    %p258 = scmp.le.s32.totalorder 2, %s10
    // Predicated region
    $region37: #{_lambda_.2} parent=5 // pred_check
      %p259 = pneg %p258
    $region38: #{_lambda_.2} parent=5 // pred_check_branch
      %261 = sbr.rel (%p259) target = $region40
    $region39: #{_lambda_.2} parent=5 // pred_region
      %s262 = ssub.s32 %s10, 2
      // Predicated region
      $region41: #{_lambda_.2} parent=39 // pred_check
        %p263 = pneg %p86
      $region42: #{_lambda_.2} parent=39 // pred_check_branch
        %265 = sbr.rel (%p263) target = $region44
      $region43: #{_lambda_.2} parent=39 // pred_region
        %p266 = scmp.lt.s32.totalorder %s16, 1
        %s267 = scalar_select %p266, %s16, 1
        %s268 = smul.addr %s267, 4
        %s269 = smul.addr %s268, 8
        %s270 = scalar_lea.vmem %s2, %s269
      $region44: #{_lambda_.2} parent=39 // pred_fallthru
        _
      // Predicated region
      $region45: #{_lambda_.2} parent=39 // pred_check
        %p271 = pneg %p112
      $region46: #{_lambda_.2} parent=39 // pred_check_branch
        %273 = sbr.rel (%p271) target = $region48
      $region47: #{_lambda_.2} parent=39 // pred_region
        %p274 = scmp.lt.s32.totalorder %s16, 1
        %s275 = scalar_select %p274, %s16, 1
        %s276 = scalar_lea.vmem %s3, %s275
      $region48: #{_lambda_.2} parent=39 // pred_fallthru
        _
    $region40: #{_lambda_.2} parent=5 // pred_fallthru
      _
  $region6: #{_lambda_.2} parent=0 // loop_footer
    %s14 = sadd.s32 1, %s10
  $region7: #{_lambda_.2} parent=0 // loop_footer_branch
    %9 = sbr.rel target = $region3
  $region8: #{_lambda_.2} parent=0 // loop_exit
    _

// kernel: _lambda_.3
$region0: #{_lambda_.3}
  #allocation0 [shape = 'u32[]', space=smem, size = 0x4, offset = 0x4, fixed_abs, tag = 'smem constant byte address 0x4 - core index']
  #allocation1 [shape = 'u32[72,128]{1,0:T(1,128)}', space=vmem, size = 0x9000, scoped, tag = 'internal scratch']
  #allocation2 [shape = 'f32[2,16,16]{2,1,0:T(8,128)}', space=vmem, size = 0x4000, scoped, tag = 'scratch operand']
  #allocation3 [shape = 'f32[1]{0:T(128)S(6)}', space=smem, size = 0x200, scoped, tag = 'scoped memory for _lambda_.3']
  #allocation4 [shape = 'f32[1,1]{1,0:T(1,128)S(1)}', space=vmem, size = 0x200, scoped, tag = 'scoped memory for _lambda_.3']
  %s0 = inlined_call_operand.<no memory space> [shape: f32[1], index: 0, kind: input, shape index: {}]
  %s1 = inlined_call_operand.vmem [shape: f32[2,64,32], index: 1, kind: input, shape index: {}]
  %s2 = inlined_call_operand.vmem [shape: f32[2,1,16], index: 2, kind: input, shape index: {}]
  %s3 = inlined_call_operand.vmem [shape: f32[16,32], index: 3, kind: input, shape index: {}]
  %s4 = inlined_call_operand.vmem [shape: f32[1,32], index: 4, kind: input, shape index: {}]
  %s5 = inlined_call_operand.vmem [shape: f32[32,16], index: 5, kind: input, shape index: {}]
  %s6 = inlined_call_operand.vmem [shape: f32[32,16], index: 6, kind: input, shape index: {}]
  %s7 = inlined_call_operand.vmem [shape: f32[16,512], index: 7, kind: input, shape index: {}]
  %s8 = inlined_call_operand.vmem [shape: f32[1,512], index: 8, kind: input, shape index: {}]
  %s9 = inlined_call_operand.vmem [shape: f32[1,512], index: 9, kind: input, shape index: {}]
  %s10 = inlined_call_operand.<no memory space> [shape: f32[1,1], index: 10, kind: input, shape index: {}]
  %s11 = inlined_call_operand.hbm [shape: f32[2,1,32], index: 11, kind: output, shape index: {0}]
  %s12 = inlined_call_operand.hbm [shape: f32[2,1,64], index: 12, kind: output, shape index: {1}]
  %13 = xla_tuple %s11, %s12
  %s14 = sld [smem:[#allocation0]]
  $region62: #{_lambda_.3} parent=0
    _
  %s16 = ssub.s32 1, %s14
  %s17 = scalar_select 0, %s16, %s14
  %18 = sst [smem:[#allocation3]] %s0
  %v19 = vstv %s10
  %20 = vst [vmem:[#allocation4] sm:$0x1] %v19
  $region1: #{_lambda_.3} parent=0
    #allocation5 [shape = 'u8[1024]{0}', space=vmem, size = 0x400, scoped, tag = 'output window, operand 0, single buffered']
    #allocation6 [shape = 's32[1]{0}', space=sflag, size = 0x4, scoped, tag = 'scoped memory for _lambda_.3']
    #allocation7 [shape = 'u8[1024]{0}', space=vmem, size = 0x400, scoped, tag = 'output window, operand 1, single buffered']
    #allocation8 [shape = 's32[1]{0}', space=sflag, size = 0x4, scoped, tag = 'scoped memory for _lambda_.3']
    %21 = vsyncpa [#allocation6], 0
    %22 = vsyncpa [#allocation8], 0
    // Predicated region
    $region2: #{_lambda_.3} parent=1 // pred_check
      _
    $region3: #{_lambda_.3} parent=1 // pred_check_branch
      %24 = sbr.rel (0) target = $region5
    $region4: #{_lambda_.3} parent=1 // pred_region
      _
    $region5: #{_lambda_.3} parent=1 // pred_fallthru
      _
    // Predicated region
    $region6: #{_lambda_.3} parent=1 // pred_check
      _
    $region7: #{_lambda_.3} parent=1 // pred_check_branch
      %26 = sbr.rel (0) target = $region9
    $region8: #{_lambda_.3} parent=1 // pred_region
      _
    $region9: #{_lambda_.3} parent=1 // pred_fallthru
      _
    // Predicated region
    $region10: #{_lambda_.3} parent=1 // pred_check
      _
    $region11: #{_lambda_.3} parent=1 // pred_check_branch
      %28 = sbr.rel (0) target = $region13
    $region12: #{_lambda_.3} parent=1 // pred_region
      _
    $region13: #{_lambda_.3} parent=1 // pred_fallthru
      _
    // Predicated region
    $region14: #{_lambda_.3} parent=1 // pred_check
      _
    $region15: #{_lambda_.3} parent=1 // pred_check_branch
      %30 = sbr.rel (0) target = $region17
    $region16: #{_lambda_.3} parent=1 // pred_region
      _
    $region17: #{_lambda_.3} parent=1 // pred_fallthru
      _
    // Predicated region
    $region18: #{_lambda_.3} parent=1 // pred_check
      _
    $region19: #{_lambda_.3} parent=1 // pred_check_branch
      %32 = sbr.rel (0) target = $region21
    $region20: #{_lambda_.3} parent=1 // pred_region
      _
    $region21: #{_lambda_.3} parent=1 // pred_fallthru
      _
    // Predicated region
    $region22: #{_lambda_.3} parent=1 // pred_check
      _
    $region23: #{_lambda_.3} parent=1 // pred_check_branch
      %34 = sbr.rel (0) target = $region25
    $region24: #{_lambda_.3} parent=1 // pred_region
      _
    $region25: #{_lambda_.3} parent=1 // pred_fallthru
      _
    // Predicated region
    $region26: #{_lambda_.3} parent=1 // pred_check
      _
    $region27: #{_lambda_.3} parent=1 // pred_check_branch
      %36 = sbr.rel (0) target = $region29
    $region28: #{_lambda_.3} parent=1 // pred_region
      _
    $region29: #{_lambda_.3} parent=1 // pred_fallthru
      _
    // Predicated region
    $region30: #{_lambda_.3} parent=1 // pred_check
      _
    $region31: #{_lambda_.3} parent=1 // pred_check_branch
      %38 = sbr.rel (0) target = $region33
    $region32: #{_lambda_.3} parent=1 // pred_region
      _
    $region33: #{_lambda_.3} parent=1 // pred_fallthru
      _
    // Predicated region
    $region34: #{_lambda_.3} parent=1 // pred_check
      _
    $region35: #{_lambda_.3} parent=1 // pred_check_branch
      %40 = sbr.rel (0) target = $region37
    $region36: #{_lambda_.3} parent=1 // pred_region
      _
    $region37: #{_lambda_.3} parent=1 // pred_fallthru
      _
    // Predicated region
    $region38: #{_lambda_.3} parent=1 // pred_check
      _
    $region39: #{_lambda_.3} parent=1 // pred_check_branch
      %42 = sbr.rel (0) target = $region41
    $region40: #{_lambda_.3} parent=1 // pred_region
      _
    $region41: #{_lambda_.3} parent=1 // pred_fallthru
      _
    // Predicated region
    $region42: #{_lambda_.3} parent=1 // pred_check
      _
    $region43: #{_lambda_.3} parent=1 // pred_check_branch
      %44 = sbr.rel (0) target = $region45
    $region44: #{_lambda_.3} parent=1 // pred_region
      _
    $region45: #{_lambda_.3} parent=1 // pred_fallthru
      _
    %s46 = sld [smem:[#allocation3]]
    %v47 = vld [vmem:[%s1] sm:$0xff]
    %v48 = vld [vmem:[%s1 + $0x8] sm:$0xff]
    %v49 = vld [vmem:[%s1 + $0x10] sm:$0xff]
    %v50 = vld [vmem:[%s1 + $0x18] sm:$0xff]
    %v51 = vld [vmem:[%s1 + $0x20] sm:$0xff]
    %v52 = vld [vmem:[%s1 + $0x28] sm:$0xff]
    %v53 = vld [vmem:[%s1 + $0x30] sm:$0xff]
    %v54 = vld [vmem:[%s1 + $0x38] sm:$0xff]
    %v55 = vld [vmem:[%s1 + $0x40] sm:$0xff]
    %v56 = vld [vmem:[%s1 + $0x48] sm:$0xff]
    %v57 = vld [vmem:[%s1 + $0x50] sm:$0xff]
    %v58 = vld [vmem:[%s1 + $0x58] sm:$0xff]
    %v59 = vld [vmem:[%s1 + $0x60] sm:$0xff]
    %v60 = vld [vmem:[%s1 + $0x68] sm:$0xff]
    %v61 = vld [vmem:[%s1 + $0x70] sm:$0xff]
    %v62 = vld [vmem:[%s1 + $0x78] sm:$0xff]
    %v63 = vstv %s46
    %v64 = vmul.f32 %v47, %v63
    %v65 = vmul.f32 %v48, %v63
    %v66 = vmul.f32 %v49, %v63
    %v67 = vmul.f32 %v50, %v63
    %v68 = vmul.f32 %v51, %v63
    %v69 = vmul.f32 %v52, %v63
    %v70 = vmul.f32 %v53, %v63
    %v71 = vmul.f32 %v54, %v63
    %v72 = vmul.f32 %v55, %v63
    %v73 = vmul.f32 %v56, %v63
    %v74 = vmul.f32 %v57, %v63
    %v75 = vmul.f32 %v58, %v63
    %v76 = vmul.f32 %v59, %v63
    %v77 = vmul.f32 %v60, %v63
    %v78 = vmul.f32 %v61, %v63
    %v79 = vmul.f32 %v62, %v63
    %vm80 = vcmask 261120
    %v81 = vsel %vm80, %v64, 0.0
    %v82 = vsel %vm80, %v65, 0.0
    %v83 = vadd.f32 %v81, %v82
    %v84 = vsel %vm80, %v66, 0.0
    %v85 = vadd.f32 %v83, %v84
    %v86 = vsel %vm80, %v67, 0.0
    %v87 = vadd.f32 %v85, %v86
    %v88 = vsel %vm80, %v68, 0.0
    %v89 = vadd.f32 %v87, %v88
    %v90 = vsel %vm80, %v69, 0.0
    %v91 = vadd.f32 %v89, %v90
    %v92 = vsel %vm80, %v70, 0.0
    %v93 = vadd.f32 %v91, %v92
    %v94 = vsel %vm80, %v71, 0.0
    %v95 = vadd.f32 %v93, %v94
    %v96 = vrot.slane %v95, 4
    %v97 = vadd.f32 %v95, %v96
    %v98 = vrot.slane %v97, 2
    %v99 = vadd.f32 %v97, %v98
    %v100 = vrot.slane %v99, 1
    %v101 = vadd.f32 %v99, %v100
    %v102 = vsel %vm80, %v72, 0.0
    %v103 = vsel %vm80, %v73, 0.0
    %v104 = vadd.f32 %v102, %v103
    %v105 = vsel %vm80, %v74, 0.0
    %v106 = vadd.f32 %v104, %v105
    %v107 = vsel %vm80, %v75, 0.0
    %v108 = vadd.f32 %v106, %v107
    %v109 = vsel %vm80, %v76, 0.0
    %v110 = vadd.f32 %v108, %v109
    %v111 = vsel %vm80, %v77, 0.0
    %v112 = vadd.f32 %v110, %v111
    %v113 = vsel %vm80, %v78, 0.0
    %v114 = vadd.f32 %v112, %v113
    %v115 = vsel %vm80, %v79, 0.0
    %v116 = vadd.f32 %v114, %v115
    %v117 = vrot.slane %v116, 4
    %v118 = vadd.f32 %v116, %v117
    %v119 = vrot.slane %v118, 2
    %v120 = vadd.f32 %v118, %v119
    %v121 = vrot.slane %v120, 1
    %v122 = vadd.f32 %v120, %v121
    %vm123 = vcmask 253952
    %124 = vst.msk [vmem:[#allocation5] sm:$0x1] %vm123, %v101
    %125 = vst.msk [vmem:[#allocation5 + $0x1] sm:$0x1] %vm123, %v122
    %v126 = vld [vmem:[%s2] sm:$0x1]
    %v127 = vld [vmem:[%s2 + $0x1] sm:$0x1]
    %v128 = vpack.c.bf16 %v126, %v126
    %v129 = vpack.c.bf16 %v127, %v127
    %v130 = vld [vmem:[%s3] sm:$0xff]
    %v131 = vld [vmem:[%s3 + $0x8] sm:$0xff]
    %v132 = vpack.c.bf16 %v131, %v130
    %v133 = vld [vmem:[%s4] sm:$0x1]
    %v135 = vperm.slane %v133, 0
    %v139 = vunpack.c.l.b16 %v128
    %v140 = vunpack.c.l.b16 %v129
    %v141 = vrot.slane %v140, 7
    %vm142 = vcmask 1041409
    %v143 = vsel %vm142, %v141, %v139
    %v144 = vpack.c.b16 %v143, %v143
    %vm145 = vcmask 130048
    %v147 = vsel %vm145, %v144, 0
    %149 = vmatpush.bf16.msra.mxu0 0
    %150 = vmatpush.bf16.msra.mxu0 0
    %151 = vmatpush.bf16.msra.mxu0 0
    %152 = vmatpush.bf16.msra.mxu0 0
    %153 = vmatpush.bf16.msra.mxu0 0
    %154 = vmatpush.bf16.msra.mxu0 0
    %155 = vmatpush.bf16.msra.mxu0 0
    %156 = vmatpush.bf16.msra.mxu0 %v132
    %157 = vmatmul.bf16.gmra.mxu0 %v147
    %v158 = vpop.f32.mrf.mxu0
    %v159 = vadd.f32 %v135, %v158
    %v160 = vpop.f32.mrf.mxu0
    %161 = vdwg.mxu0
    %v162 = vpack.c.bf16 %v159, %v159
    %v163 = vld [vmem:[%s5] sm:$0xff]
    %v164 = vld [vmem:[%s5 + $0x8] sm:$0xff]
    %v165 = vld [vmem:[%s5 + $0x10] sm:$0xff]
    %v166 = vld [vmem:[%s5 + $0x18] sm:$0xff]
    %v167 = vpack.c.bf16 %v164, %v163
    %v168 = vpack.c.bf16 %v166, %v165
    %v170 = vsel %vm80, %v162, 0
    %172 = vmatpush.bf16.msra.mxu0 0
    %173 = vmatpush.bf16.msra.mxu0 0
    %174 = vmatpush.bf16.msra.mxu0 0
    %175 = vmatpush.bf16.msra.mxu0 0
    %176 = vmatpush.bf16.msra.mxu0 0
    %177 = vmatpush.bf16.msra.mxu0 0
    %178 = vmatpush.bf16.msra.mxu0 %v168
    %179 = vmatpush.bf16.msra.mxu0 %v167
    %180 = vmatmul.bf16.gmra.mxu0 %v170
    %v181 = vpop.f32.mrf.mxu0
    %v182 = vadd.f32 0.0, %v181
    %v183 = vpop.f32.mrf.mxu0
    %184 = vdwg.mxu0
    %v185 = vpack.c.bf16 %v65, %v64
    %v186 = vpack.c.bf16 %v67, %v66
    %v187 = vpack.c.bf16 %v69, %v68
    %v188 = vpack.c.bf16 %v71, %v70
    %v189 = vpack.c.bf16 %v73, %v72
    %v190 = vpack.c.bf16 %v75, %v74
    %v191 = vpack.c.bf16 %v77, %v76
    %v192 = vpack.c.bf16 %v79, %v78
    %v193 = vld [vmem:[%s6] sm:$0xff]
    %v194 = vld [vmem:[%s6 + $0x8] sm:$0xff]
    %v195 = vld [vmem:[%s6 + $0x10] sm:$0xff]
    %v196 = vld [vmem:[%s6 + $0x18] sm:$0xff]
    %v197 = vpack.c.bf16 %v194, %v193
    %v198 = vpack.c.bf16 %v196, %v195
    %v200 = vsel %vm80, %v185, 0
    %v203 = vsel %vm80, %v186, 0
    %v206 = vsel %vm80, %v187, 0
    %v209 = vsel %vm80, %v188, 0
    %v212 = vsel %vm80, %v189, 0
    %v215 = vsel %vm80, %v190, 0
    %v218 = vsel %vm80, %v191, 0
    %v221 = vsel %vm80, %v192, 0
    %223 = vmatpush.bf16.msra.mxu0 0
    %224 = vmatpush.bf16.msra.mxu0 0
    %225 = vmatpush.bf16.msra.mxu0 0
    %226 = vmatpush.bf16.msra.mxu0 0
    %227 = vmatpush.bf16.msra.mxu0 0
    %228 = vmatpush.bf16.msra.mxu0 0
    %229 = vmatpush.bf16.msra.mxu0 %v198
    %230 = vmatpush.bf16.msra.mxu0 %v197
    %231 = vmatmul.bf16.gmra.mxu0 %v200
    %v232 = vpop.f32.mrf.mxu0
    %v233 = vadd.f32 0.0, %v232
    %v234 = vpop.f32.mrf.mxu0
    %v235 = vadd.f32 0.0, %v234
    %236 = vmatmul.bf16.gmra.mxu0 %v203
    %v237 = vpop.f32.mrf.mxu0
    %v238 = vadd.f32 0.0, %v237
    %v239 = vpop.f32.mrf.mxu0
    %v240 = vadd.f32 0.0, %v239
    %241 = vmatmul.bf16.gmra.mxu0 %v206
    %v242 = vpop.f32.mrf.mxu0
    %v243 = vadd.f32 0.0, %v242
    %v244 = vpop.f32.mrf.mxu0
    %v245 = vadd.f32 0.0, %v244
    %246 = vmatmul.bf16.gmra.mxu0 %v209
    %v247 = vpop.f32.mrf.mxu0
    %v248 = vadd.f32 0.0, %v247
    %v249 = vpop.f32.mrf.mxu0
    %v250 = vadd.f32 0.0, %v249
    %251 = vmatmul.bf16.gmra.mxu0 %v212
    %v252 = vpop.f32.mrf.mxu0
    %v253 = vadd.f32 0.0, %v252
    %v254 = vpop.f32.mrf.mxu0
    %v255 = vadd.f32 0.0, %v254
    %256 = vmatmul.bf16.gmra.mxu0 %v215
    %v257 = vpop.f32.mrf.mxu0
    %v258 = vadd.f32 0.0, %v257
    %v259 = vpop.f32.mrf.mxu0
    %v260 = vadd.f32 0.0, %v259
    %261 = vmatmul.bf16.gmra.mxu0 %v218
    %v262 = vpop.f32.mrf.mxu0
    %v263 = vadd.f32 0.0, %v262
    %v264 = vpop.f32.mrf.mxu0
    %v265 = vadd.f32 0.0, %v264
    %266 = vmatmul.bf16.gmra.mxu0 %v221
    %v267 = vpop.f32.mrf.mxu0
    %v268 = vadd.f32 0.0, %v267
    %v269 = vpop.f32.mrf.mxu0
    %v270 = vadd.f32 0.0, %v269
    %271 = vdwg.mxu0
    %273 = vrot.lane.b32.xlu0 %v182, 16
    %v274 = vpop.permute.xlu0 %273
    %v276 = vsel %vm145, %v182, %v274
    %v278 = vrot.slane %v276, 1
    %v279 = vperm.slane %v276, 0
    %v280 = vperm.slane %v278, 0
    %281 = vrot.lane.b32.xlu0 %v279, 112
    %v282 = vpop.permute.xlu0 %281
    %283 = vrot.lane.b32.xlu0 %v280, 112
    %v284 = vpop.permute.xlu0 %283
    %vm287 = vcmask 122880
    %288 = vst.msk [vmem:[#allocation2] sm:$0x1] %vm287, %v282
    %289 = vst.msk [vmem:[#allocation2 + $0x10] sm:$0x1] %vm287, %v284
    %290 = vrot.lane.b32.xlu0 %v279, 113
    %v291 = vpop.permute.xlu0 %290
    %292 = vrot.lane.b32.xlu0 %v280, 113
    %v293 = vpop.permute.xlu0 %292
    %296 = vst.msk [vmem:[#allocation2 + $0x1] sm:$0x1] %vm287, %v291
    %297 = vst.msk [vmem:[#allocation2 + $0x11] sm:$0x1] %vm287, %v293
    %298 = vrot.lane.b32.xlu0 %v279, 114
    %v299 = vpop.permute.xlu0 %298
    %300 = vrot.lane.b32.xlu0 %v280, 114
    %v301 = vpop.permute.xlu0 %300
    %304 = vst.msk [vmem:[#allocation2 + $0x2] sm:$0x1] %vm287, %v299
    %305 = vst.msk [vmem:[#allocation2 + $0x12] sm:$0x1] %vm287, %v301
    %306 = vrot.lane.b32.xlu0 %v279, 115
    %v307 = vpop.permute.xlu0 %306
    %308 = vrot.lane.b32.xlu0 %v280, 115
    %v309 = vpop.permute.xlu0 %308
    %312 = vst.msk [vmem:[#allocation2 + $0x3] sm:$0x1] %vm287, %v307
    %313 = vst.msk [vmem:[#allocation2 + $0x13] sm:$0x1] %vm287, %v309
    %314 = vrot.lane.b32.xlu0 %v279, 116
    %v315 = vpop.permute.xlu0 %314
    %316 = vrot.lane.b32.xlu0 %v280, 116
    %v317 = vpop.permute.xlu0 %316
    %320 = vst.msk [vmem:[#allocation2 + $0x4] sm:$0x1] %vm287, %v315
    %321 = vst.msk [vmem:[#allocation2 + $0x14] sm:$0x1] %vm287, %v317
    %322 = vrot.lane.b32.xlu0 %v279, 117
    %v323 = vpop.permute.xlu0 %322
    %324 = vrot.lane.b32.xlu0 %v280, 117
    %v325 = vpop.permute.xlu0 %324
    %328 = vst.msk [vmem:[#allocation2 + $0x5] sm:$0x1] %vm287, %v323
    %329 = vst.msk [vmem:[#allocation2 + $0x15] sm:$0x1] %vm287, %v325
    %330 = vrot.lane.b32.xlu0 %v279, 118
    %v331 = vpop.permute.xlu0 %330
    %332 = vrot.lane.b32.xlu0 %v280, 118
    %v333 = vpop.permute.xlu0 %332
    %336 = vst.msk [vmem:[#allocation2 + $0x6] sm:$0x1] %vm287, %v331
    %337 = vst.msk [vmem:[#allocation2 + $0x16] sm:$0x1] %vm287, %v333
    %338 = vrot.lane.b32.xlu0 %v279, 119
    %v339 = vpop.permute.xlu0 %338
    %340 = vrot.lane.b32.xlu0 %v280, 119
    %v341 = vpop.permute.xlu0 %340
    %344 = vst.msk [vmem:[#allocation2 + $0x7] sm:$0x1] %vm287, %v339
    %345 = vst.msk [vmem:[#allocation2 + $0x17] sm:$0x1] %vm287, %v341
    %346 = vrot.lane.b32.xlu0 %v279, 120
    %v347 = vpop.permute.xlu0 %346
    %348 = vrot.lane.b32.xlu0 %v280, 120
    %v349 = vpop.permute.xlu0 %348
    %352 = vst.msk [vmem:[#allocation2 + $0x8] sm:$0x1] %vm287, %v347
    %353 = vst.msk [vmem:[#allocation2 + $0x18] sm:$0x1] %vm287, %v349
    %354 = vrot.lane.b32.xlu0 %v279, 121
    %v355 = vpop.permute.xlu0 %354
    %356 = vrot.lane.b32.xlu0 %v280, 121
    %v357 = vpop.permute.xlu0 %356
    %360 = vst.msk [vmem:[#allocation2 + $0x9] sm:$0x1] %vm287, %v355
    %361 = vst.msk [vmem:[#allocation2 + $0x19] sm:$0x1] %vm287, %v357
    %362 = vrot.lane.b32.xlu0 %v279, 122
    %v363 = vpop.permute.xlu0 %362
    %364 = vrot.lane.b32.xlu0 %v280, 122
    %v365 = vpop.permute.xlu0 %364
    %368 = vst.msk [vmem:[#allocation2 + $0xa] sm:$0x1] %vm287, %v363
    %369 = vst.msk [vmem:[#allocation2 + $0x1a] sm:$0x1] %vm287, %v365
    %370 = vrot.lane.b32.xlu0 %v279, 123
    %v371 = vpop.permute.xlu0 %370
    %372 = vrot.lane.b32.xlu0 %v280, 123
    %v373 = vpop.permute.xlu0 %372
    %376 = vst.msk [vmem:[#allocation2 + $0xb] sm:$0x1] %vm287, %v371
    %377 = vst.msk [vmem:[#allocation2 + $0x1b] sm:$0x1] %vm287, %v373
    %378 = vrot.lane.b32.xlu0 %v279, 124
    %v379 = vpop.permute.xlu0 %378
    %380 = vrot.lane.b32.xlu0 %v280, 124
    %v381 = vpop.permute.xlu0 %380
    %384 = vst.msk [vmem:[#allocation2 + $0xc] sm:$0x1] %vm287, %v379
    %385 = vst.msk [vmem:[#allocation2 + $0x1c] sm:$0x1] %vm287, %v381
    %386 = vrot.lane.b32.xlu0 %v279, 125
    %v387 = vpop.permute.xlu0 %386
    %388 = vrot.lane.b32.xlu0 %v280, 125
    %v389 = vpop.permute.xlu0 %388
    %392 = vst.msk [vmem:[#allocation2 + $0xd] sm:$0x1] %vm287, %v387
    %393 = vst.msk [vmem:[#allocation2 + $0x1d] sm:$0x1] %vm287, %v389
    %394 = vrot.lane.b32.xlu0 %v279, 126
    %v395 = vpop.permute.xlu0 %394
    %396 = vrot.lane.b32.xlu0 %v280, 126
    %v397 = vpop.permute.xlu0 %396
    %400 = vst.msk [vmem:[#allocation2 + $0xe] sm:$0x1] %vm287, %v395
    %401 = vst.msk [vmem:[#allocation2 + $0x1e] sm:$0x1] %vm287, %v397
    %402 = vrot.lane.b32.xlu0 %v279, 127
    %v403 = vpop.permute.xlu0 %402
    %404 = vrot.lane.b32.xlu0 %v280, 127
    %v405 = vpop.permute.xlu0 %404
    %408 = vst.msk [vmem:[#allocation2 + $0xf] sm:$0x1] %vm287, %v403
    %409 = vst.msk [vmem:[#allocation2 + $0x1f] sm:$0x1] %vm287, %v405
    %v410 = vpack.c.bf16 %v233, %v233
    %v411 = vpack.c.bf16 %v235, %v235
    %v412 = vpack.c.bf16 %v238, %v238
    %v413 = vpack.c.bf16 %v240, %v240
    %v414 = vpack.c.bf16 %v243, %v243
    %v415 = vpack.c.bf16 %v245, %v245
    %v416 = vpack.c.bf16 %v248, %v248
    %v417 = vpack.c.bf16 %v250, %v250
    %v418 = vpack.c.bf16 %v253, %v253
    %v419 = vpack.c.bf16 %v255, %v255
    %v420 = vpack.c.bf16 %v258, %v258
    %v421 = vpack.c.bf16 %v260, %v260
    %v422 = vpack.c.bf16 %v263, %v263
    %v423 = vpack.c.bf16 %v265, %v265
    %v424 = vpack.c.bf16 %v268, %v268
    %v425 = vpack.c.bf16 %v270, %v270
    %v426 = vld [vmem:[#allocation2] sm:$0xff]
    %v427 = vld [vmem:[#allocation2 + $0x8] sm:$0xff]
    %v428 = vld [vmem:[#allocation2 + $0x10] sm:$0xff]
    %v429 = vld [vmem:[#allocation2 + $0x18] sm:$0xff]
    %v430 = vpack.c.bf16 %v426, %v426
    %v431 = vpack.c.bf16 %v427, %v427
    %v432 = vpack.c.bf16 %v428, %v428
    %v433 = vpack.c.bf16 %v429, %v429
    %v442 = vunpack.c.l.b16 %v410
    %v443 = vunpack.c.l.b16 %v411
    %v444 = vunpack.c.l.b16 %v412
    %v445 = vunpack.c.l.b16 %v413
    %v446 = vunpack.c.l.b16 %v414
    %v447 = vunpack.c.l.b16 %v415
    %v448 = vunpack.c.l.b16 %v416
    %v449 = vunpack.c.l.b16 %v417
    %v450 = vpack.c.b16 %v443, %v442
    %v451 = vpack.c.b16 %v445, %v444
    %v452 = vpack.c.b16 %v447, %v446
    %v453 = vpack.c.b16 %v449, %v448
    %v456 = vunpack.c.l.b16 %v430
    %v457 = vunpack.c.l.b16 %v431
    %v458 = vpack.c.b16 %v457, %v456
    %v461 = vsel %vm145, %v450, 0
    %v464 = vsel %vm145, %v451, 0
    %v467 = vsel %vm145, %v452, 0
    %v470 = vsel %vm145, %v453, 0
    %472 = vmatpush.bf16.msra.mxu0 0
    %473 = vmatpush.bf16.msra.mxu0 0
    %474 = vmatpush.bf16.msra.mxu0 0
    %475 = vmatpush.bf16.msra.mxu0 0
    %476 = vmatpush.bf16.msra.mxu0 0
    %477 = vmatpush.bf16.msra.mxu0 0
    %478 = vmatpush.bf16.msra.mxu0 0
    %479 = vmatpush.bf16.msra.mxu0 %v458
    %480 = vmatmul.bf16.gmra.mxu0 %v461
    %v481 = vpop.f32.mrf.mxu0
    %v482 = vadd.f32 0.0, %v481
    %v483 = vpop.f32.mrf.mxu0
    %v484 = vadd.f32 0.0, %v483
    %485 = vmatmul.bf16.gmra.mxu0 %v464
    %v486 = vpop.f32.mrf.mxu0
    %v487 = vadd.f32 0.0, %v486
    %v488 = vpop.f32.mrf.mxu0
    %v489 = vadd.f32 0.0, %v488
    %490 = vmatmul.bf16.gmra.mxu0 %v467
    %v491 = vpop.f32.mrf.mxu0
    %v492 = vadd.f32 0.0, %v491
    %v493 = vpop.f32.mrf.mxu0
    %v494 = vadd.f32 0.0, %v493
    %495 = vmatmul.bf16.gmra.mxu0 %v470
    %v496 = vpop.f32.mrf.mxu0
    %v497 = vadd.f32 0.0, %v496
    %v498 = vpop.f32.mrf.mxu0
    %v499 = vadd.f32 0.0, %v498
    %500 = vdwg.mxu0
    %v509 = vunpack.c.l.b16 %v418
    %v510 = vunpack.c.l.b16 %v419
    %v511 = vunpack.c.l.b16 %v420
    %v512 = vunpack.c.l.b16 %v421
    %v513 = vunpack.c.l.b16 %v422
    %v514 = vunpack.c.l.b16 %v423
    %v515 = vunpack.c.l.b16 %v424
    %v516 = vunpack.c.l.b16 %v425
    %v517 = vpack.c.b16 %v510, %v509
    %v518 = vpack.c.b16 %v512, %v511
    %v519 = vpack.c.b16 %v514, %v513
    %v520 = vpack.c.b16 %v516, %v515
    %v523 = vunpack.c.l.b16 %v432
    %v524 = vunpack.c.l.b16 %v433
    %v525 = vpack.c.b16 %v524, %v523
    %v528 = vsel %vm145, %v517, 0
    %v531 = vsel %vm145, %v518, 0
    %v534 = vsel %vm145, %v519, 0
    %v537 = vsel %vm145, %v520, 0
    %539 = vmatpush.bf16.msra.mxu0 0
    %540 = vmatpush.bf16.msra.mxu0 0
    %541 = vmatpush.bf16.msra.mxu0 0
    %542 = vmatpush.bf16.msra.mxu0 0
    %543 = vmatpush.bf16.msra.mxu0 0
    %544 = vmatpush.bf16.msra.mxu0 0
    %545 = vmatpush.bf16.msra.mxu0 0
    %546 = vmatpush.bf16.msra.mxu0 %v525
    %547 = vmatmul.bf16.gmra.mxu0 %v528
    %v548 = vpop.f32.mrf.mxu0
    %v549 = vadd.f32 0.0, %v548
    %v550 = vpop.f32.mrf.mxu0
    %v551 = vadd.f32 0.0, %v550
    %552 = vmatmul.bf16.gmra.mxu0 %v531
    %v553 = vpop.f32.mrf.mxu0
    %v554 = vadd.f32 0.0, %v553
    %v555 = vpop.f32.mrf.mxu0
    %v556 = vadd.f32 0.0, %v555
    %557 = vmatmul.bf16.gmra.mxu0 %v534
    %v558 = vpop.f32.mrf.mxu0
    %v559 = vadd.f32 0.0, %v558
    %v560 = vpop.f32.mrf.mxu0
    %v561 = vadd.f32 0.0, %v560
    %562 = vmatmul.bf16.gmra.mxu0 %v537
    %v563 = vpop.f32.mrf.mxu0
    %v564 = vadd.f32 0.0, %v563
    %v565 = vpop.f32.mrf.mxu0
    %v566 = vadd.f32 0.0, %v565
    %567 = vdwg.mxu0
    %v568 = vpack.c.bf16 %v484, %v482
    %v569 = vpack.c.bf16 %v489, %v487
    %v570 = vpack.c.bf16 %v494, %v492
    %v571 = vpack.c.bf16 %v499, %v497
    %v572 = vpack.c.bf16 %v551, %v549
    %v573 = vpack.c.bf16 %v556, %v554
    %v574 = vpack.c.bf16 %v561, %v559
    %v575 = vpack.c.bf16 %v566, %v564
    %v576 = vld [vmem:[%s7] sm:$0xff]
    %v577 = vld [vmem:[%s7 + $0x8] sm:$0xff]
    %v578 = vld [vmem:[%s7 + $0x10] sm:$0xff]
    %v579 = vld [vmem:[%s7 + $0x18] sm:$0xff]
    %v580 = vld [vmem:[%s7 + $0x20] sm:$0xff]
    %v581 = vld [vmem:[%s7 + $0x28] sm:$0xff]
    %v582 = vld [vmem:[%s7 + $0x30] sm:$0xff]
    %v583 = vld [vmem:[%s7 + $0x38] sm:$0xff]
    %v584 = vpack.c.bf16 %v580, %v576
    %v585 = vpack.c.bf16 %v581, %v577
    %v586 = vpack.c.bf16 %v582, %v578
    %v587 = vpack.c.bf16 %v583, %v579
    %v588 = vld [vmem:[%s8] sm:$0xf]
    %v590 = vperm.slane %v588, 0
    %v591 = vperm.slane %v588, 1
    %v592 = vperm.slane %v588, 2
    %v593 = vperm.slane %v588, 3
    %v599 = vsel %vm145, %v568, 0
    %v602 = vsel %vm145, %v569, 0
    %v605 = vsel %vm145, %v570, 0
    %v608 = vsel %vm145, %v571, 0
    %v611 = vsel %vm145, %v572, 0
    %v614 = vsel %vm145, %v573, 0
    %v617 = vsel %vm145, %v574, 0
    %v620 = vsel %vm145, %v575, 0
    %622 = vmatpush.bf16.msra.mxu0 0
    %623 = vmatpush.bf16.msra.mxu0 0
    %624 = vmatpush.bf16.msra.mxu0 0
    %625 = vmatpush.bf16.msra.mxu0 0
    %626 = vmatpush.bf16.msra.mxu0 0
    %627 = vmatpush.bf16.msra.mxu0 0
    %628 = vmatpush.bf16.msra.mxu0 0
    %629 = vmatpush.bf16.msra.mxu0 %v584
    %630 = vmatmul.bf16.gmra.mxu0 %v599
    %v631 = vpop.f32.mrf.mxu0
    %v632 = vadd.f32 %v590, %v631
    %v633 = vpop.f32.mrf.mxu0
    %v634 = vadd.f32 %v590, %v633
    %635 = vmatmul.bf16.gmra.mxu0 %v602
    %v636 = vpop.f32.mrf.mxu0
    %v637 = vadd.f32 %v590, %v636
    %v638 = vpop.f32.mrf.mxu0
    %v639 = vadd.f32 %v590, %v638
    %640 = vmatmul.bf16.gmra.mxu0 %v605
    %v641 = vpop.f32.mrf.mxu0
    %v642 = vadd.f32 %v590, %v641
    %v643 = vpop.f32.mrf.mxu0
    %v644 = vadd.f32 %v590, %v643
    %645 = vmatmul.bf16.gmra.mxu0 %v608
    %v646 = vpop.f32.mrf.mxu0
    %v647 = vadd.f32 %v590, %v646
    %v648 = vpop.f32.mrf.mxu0
    %v649 = vadd.f32 %v590, %v648
    %650 = vmatmul.bf16.gmra.mxu0 %v611
    %v651 = vpop.f32.mrf.mxu0
    %v652 = vadd.f32 %v590, %v651
    %v653 = vpop.f32.mrf.mxu0
    %v654 = vadd.f32 %v590, %v653
    %655 = vmatmul.bf16.gmra.mxu0 %v614
    %v656 = vpop.f32.mrf.mxu0
    %v657 = vadd.f32 %v590, %v656
    %v658 = vpop.f32.mrf.mxu0
    %v659 = vadd.f32 %v590, %v658
    %660 = vmatmul.bf16.gmra.mxu0 %v617
    %v661 = vpop.f32.mrf.mxu0
    %v662 = vadd.f32 %v590, %v661
    %v663 = vpop.f32.mrf.mxu0
    %v664 = vadd.f32 %v590, %v663
    %665 = vmatmul.bf16.gmra.mxu0 %v620
    %v666 = vpop.f32.mrf.mxu0
    %v667 = vadd.f32 %v590, %v666
    %v668 = vpop.f32.mrf.mxu0
    %v669 = vadd.f32 %v590, %v668
    %670 = vdwg.mxu0
    %671 = vmatpush.bf16.msra.mxu0 0
    %672 = vmatpush.bf16.msra.mxu0 0
    %673 = vmatpush.bf16.msra.mxu0 0
    %674 = vmatpush.bf16.msra.mxu0 0
    %675 = vmatpush.bf16.msra.mxu0 0
    %676 = vmatpush.bf16.msra.mxu0 0
    %677 = vmatpush.bf16.msra.mxu0 0
    %678 = vmatpush.bf16.msra.mxu0 %v585
    %679 = vmatmul.bf16.gmra.mxu0 %v599
    %v680 = vpop.f32.mrf.mxu0
    %v681 = vadd.f32 %v591, %v680
    %v682 = vpop.f32.mrf.mxu0
    %v683 = vadd.f32 %v591, %v682
    %684 = vmatmul.bf16.gmra.mxu0 %v602
    %v685 = vpop.f32.mrf.mxu0
    %v686 = vadd.f32 %v591, %v685
    %v687 = vpop.f32.mrf.mxu0
    %v688 = vadd.f32 %v591, %v687
    %689 = vmatmul.bf16.gmra.mxu0 %v605
    %v690 = vpop.f32.mrf.mxu0
    %v691 = vadd.f32 %v591, %v690
    %v692 = vpop.f32.mrf.mxu0
    %v693 = vadd.f32 %v591, %v692
    %694 = vmatmul.bf16.gmra.mxu0 %v608
    %v695 = vpop.f32.mrf.mxu0
    %v696 = vadd.f32 %v591, %v695
    %v697 = vpop.f32.mrf.mxu0
    %v698 = vadd.f32 %v591, %v697
    %699 = vmatmul.bf16.gmra.mxu0 %v611
    %v700 = vpop.f32.mrf.mxu0
    %v701 = vadd.f32 %v591, %v700
    %v702 = vpop.f32.mrf.mxu0
    %v703 = vadd.f32 %v591, %v702
    %704 = vmatmul.bf16.gmra.mxu0 %v614
    %v705 = vpop.f32.mrf.mxu0
    %v706 = vadd.f32 %v591, %v705
    %v707 = vpop.f32.mrf.mxu0
    %v708 = vadd.f32 %v591, %v707
    %709 = vmatmul.bf16.gmra.mxu0 %v617
    %v710 = vpop.f32.mrf.mxu0
    %v711 = vadd.f32 %v591, %v710
    %v712 = vpop.f32.mrf.mxu0
    %v713 = vadd.f32 %v591, %v712
    %714 = vmatmul.bf16.gmra.mxu0 %v620
    %v715 = vpop.f32.mrf.mxu0
    %v716 = vadd.f32 %v591, %v715
    %v717 = vpop.f32.mrf.mxu0
    %v718 = vadd.f32 %v591, %v717
    %719 = vdwg.mxu0
    %720 = vmatpush.bf16.msra.mxu0 0
    %721 = vmatpush.bf16.msra.mxu0 0
    %722 = vmatpush.bf16.msra.mxu0 0
    %723 = vmatpush.bf16.msra.mxu0 0
    %724 = vmatpush.bf16.msra.mxu0 0
    %725 = vmatpush.bf16.msra.mxu0 0
    %726 = vmatpush.bf16.msra.mxu0 0
    %727 = vmatpush.bf16.msra.mxu0 %v586
    %728 = vmatmul.bf16.gmra.mxu0 %v599
    %v729 = vpop.f32.mrf.mxu0
    %v730 = vadd.f32 %v592, %v729
    %v731 = vpop.f32.mrf.mxu0
    %v732 = vadd.f32 %v592, %v731
    %733 = vmatmul.bf16.gmra.mxu0 %v602
    %v734 = vpop.f32.mrf.mxu0
    %v735 = vadd.f32 %v592, %v734
    %v736 = vpop.f32.mrf.mxu0
    %v737 = vadd.f32 %v592, %v736
    %738 = vmatmul.bf16.gmra.mxu0 %v605
    %v739 = vpop.f32.mrf.mxu0
    %v740 = vadd.f32 %v592, %v739
    %v741 = vpop.f32.mrf.mxu0
    %v742 = vadd.f32 %v592, %v741
    %743 = vmatmul.bf16.gmra.mxu0 %v608
    %v744 = vpop.f32.mrf.mxu0
    %v745 = vadd.f32 %v592, %v744
    %v746 = vpop.f32.mrf.mxu0
    %v747 = vadd.f32 %v592, %v746
    %748 = vmatmul.bf16.gmra.mxu0 %v611
    %v749 = vpop.f32.mrf.mxu0
    %v750 = vadd.f32 %v592, %v749
    %v751 = vpop.f32.mrf.mxu0
    %v752 = vadd.f32 %v592, %v751
    %753 = vmatmul.bf16.gmra.mxu0 %v614
    %v754 = vpop.f32.mrf.mxu0
    %v755 = vadd.f32 %v592, %v754
    %v756 = vpop.f32.mrf.mxu0
    %v757 = vadd.f32 %v592, %v756
    %758 = vmatmul.bf16.gmra.mxu0 %v617
    %v759 = vpop.f32.mrf.mxu0
    %v760 = vadd.f32 %v592, %v759
    %v761 = vpop.f32.mrf.mxu0
    %v762 = vadd.f32 %v592, %v761
    %763 = vmatmul.bf16.gmra.mxu0 %v620
    %v764 = vpop.f32.mrf.mxu0
    %v765 = vadd.f32 %v592, %v764
    %v766 = vpop.f32.mrf.mxu0
    %v767 = vadd.f32 %v592, %v766
    %768 = vdwg.mxu0
    %769 = vmatpush.bf16.msra.mxu0 0
    %770 = vmatpush.bf16.msra.mxu0 0
    %771 = vmatpush.bf16.msra.mxu0 0
    %772 = vmatpush.bf16.msra.mxu0 0
    %773 = vmatpush.bf16.msra.mxu0 0
    %774 = vmatpush.bf16.msra.mxu0 0
    %775 = vmatpush.bf16.msra.mxu0 0
    %776 = vmatpush.bf16.msra.mxu0 %v587
    %777 = vmatmul.bf16.gmra.mxu0 %v599
    %v778 = vpop.f32.mrf.mxu0
    %v779 = vadd.f32 %v593, %v778
    %v780 = vpop.f32.mrf.mxu0
    %v781 = vadd.f32 %v593, %v780
    %782 = vmatmul.bf16.gmra.mxu0 %v602
    %v783 = vpop.f32.mrf.mxu0
    %v784 = vadd.f32 %v593, %v783
    %v785 = vpop.f32.mrf.mxu0
    %v786 = vadd.f32 %v593, %v785
    %787 = vmatmul.bf16.gmra.mxu0 %v605
    %v788 = vpop.f32.mrf.mxu0
    %v789 = vadd.f32 %v593, %v788
    %v790 = vpop.f32.mrf.mxu0
    %v791 = vadd.f32 %v593, %v790
    %792 = vmatmul.bf16.gmra.mxu0 %v608
    %v793 = vpop.f32.mrf.mxu0
    %v794 = vadd.f32 %v593, %v793
    %v795 = vpop.f32.mrf.mxu0
    %v796 = vadd.f32 %v593, %v795
    %797 = vmatmul.bf16.gmra.mxu0 %v611
    %v798 = vpop.f32.mrf.mxu0
    %v799 = vadd.f32 %v593, %v798
    %v800 = vpop.f32.mrf.mxu0
    %v801 = vadd.f32 %v593, %v800
    %802 = vmatmul.bf16.gmra.mxu0 %v614
    %v803 = vpop.f32.mrf.mxu0
    %v804 = vadd.f32 %v593, %v803
    %v805 = vpop.f32.mrf.mxu0
    %v806 = vadd.f32 %v593, %v805
    %807 = vmatmul.bf16.gmra.mxu0 %v617
    %v808 = vpop.f32.mrf.mxu0
    %v809 = vadd.f32 %v593, %v808
    %v810 = vpop.f32.mrf.mxu0
    %v811 = vadd.f32 %v593, %v810
    %812 = vmatmul.bf16.gmra.mxu0 %v620
    %v813 = vpop.f32.mrf.mxu0
    %v814 = vadd.f32 %v593, %v813
    %v815 = vpop.f32.mrf.mxu0
    %v816 = vadd.f32 %v593, %v815
    %817 = vdwg.mxu0
    %v818 = vmax.f32 %v632, 0.0
    %v819 = vmax.f32 %v681, 0.0
    %v820 = vmax.f32 %v730, 0.0
    %v821 = vmax.f32 %v779, 0.0
    %v822 = vmax.f32 %v634, 0.0
    %v823 = vmax.f32 %v683, 0.0
    %v824 = vmax.f32 %v732, 0.0
    %v825 = vmax.f32 %v781, 0.0
    %v826 = vmax.f32 %v637, 0.0
    %v827 = vmax.f32 %v686, 0.0
    %v828 = vmax.f32 %v735, 0.0
    %v829 = vmax.f32 %v784, 0.0
    %v830 = vmax.f32 %v639, 0.0
    %v831 = vmax.f32 %v688, 0.0
    %v832 = vmax.f32 %v737, 0.0
    %v833 = vmax.f32 %v786, 0.0
    %v834 = vmax.f32 %v642, 0.0
    %v835 = vmax.f32 %v691, 0.0
    %v836 = vmax.f32 %v740, 0.0
    %v837 = vmax.f32 %v789, 0.0
    %v838 = vmax.f32 %v644, 0.0
    %v839 = vmax.f32 %v693, 0.0
    %v840 = vmax.f32 %v742, 0.0
    %v841 = vmax.f32 %v791, 0.0
    %v842 = vmax.f32 %v647, 0.0
    %v843 = vmax.f32 %v696, 0.0
    %v844 = vmax.f32 %v745, 0.0
    %v845 = vmax.f32 %v794, 0.0
    %v846 = vmax.f32 %v649, 0.0
    %v847 = vmax.f32 %v698, 0.0
    %v848 = vmax.f32 %v747, 0.0
    %v849 = vmax.f32 %v796, 0.0
    %v850 = vmax.f32 %v652, 0.0
    %v851 = vmax.f32 %v701, 0.0
    %v852 = vmax.f32 %v750, 0.0
    %v853 = vmax.f32 %v799, 0.0
    %v854 = vmax.f32 %v654, 0.0
    %v855 = vmax.f32 %v703, 0.0
    %v856 = vmax.f32 %v752, 0.0
    %v857 = vmax.f32 %v801, 0.0
    %v858 = vmax.f32 %v657, 0.0
    %v859 = vmax.f32 %v706, 0.0
    %v860 = vmax.f32 %v755, 0.0
    %v861 = vmax.f32 %v804, 0.0
    %v862 = vmax.f32 %v659, 0.0
    %v863 = vmax.f32 %v708, 0.0
    %v864 = vmax.f32 %v757, 0.0
    %v865 = vmax.f32 %v806, 0.0
    %v866 = vmax.f32 %v662, 0.0
    %v867 = vmax.f32 %v711, 0.0
    %v868 = vmax.f32 %v760, 0.0
    %v869 = vmax.f32 %v809, 0.0
    %v870 = vmax.f32 %v664, 0.0
    %v871 = vmax.f32 %v713, 0.0
    %v872 = vmax.f32 %v762, 0.0
    %v873 = vmax.f32 %v811, 0.0
    %v874 = vmax.f32 %v667, 0.0
    %v875 = vmax.f32 %v716, 0.0
    %v876 = vmax.f32 %v765, 0.0
    %v877 = vmax.f32 %v814, 0.0
    %v878 = vmax.f32 %v669, 0.0
    %v879 = vmax.f32 %v718, 0.0
    %v880 = vmax.f32 %v767, 0.0
    %v881 = vmax.f32 %v816, 0.0
    %v882 = vld [vmem:[%s9] sm:$0xf]
    %v884 = vperm.slane %v882, 0
    %v885 = vperm.slane %v882, 1
    %v886 = vperm.slane %v882, 2
    %v887 = vperm.slane %v882, 3
    %v892 = vmul.f32 %v818, %v884
    %v893 = vmul.f32 %v819, %v885
    %v894 = vmul.f32 %v820, %v886
    %v895 = vmul.f32 %v821, %v887
    %v896 = vmul.f32 %v822, %v884
    %v897 = vmul.f32 %v823, %v885
    %v898 = vmul.f32 %v824, %v886
    %v899 = vmul.f32 %v825, %v887
    %v900 = vmul.f32 %v826, %v884
    %v901 = vmul.f32 %v827, %v885
    %v902 = vmul.f32 %v828, %v886
    %v903 = vmul.f32 %v829, %v887
    %v904 = vmul.f32 %v830, %v884
    %v905 = vmul.f32 %v831, %v885
    %v906 = vmul.f32 %v832, %v886
    %v907 = vmul.f32 %v833, %v887
    %v908 = vmul.f32 %v834, %v884
    %v909 = vmul.f32 %v835, %v885
    %v910 = vmul.f32 %v836, %v886
    %v911 = vmul.f32 %v837, %v887
    %v912 = vmul.f32 %v838, %v884
    %v913 = vmul.f32 %v839, %v885
    %v914 = vmul.f32 %v840, %v886
    %v915 = vmul.f32 %v841, %v887
    %v916 = vmul.f32 %v842, %v884
    %v917 = vmul.f32 %v843, %v885
    %v918 = vmul.f32 %v844, %v886
    %v919 = vmul.f32 %v845, %v887
    %v920 = vmul.f32 %v846, %v884
    %v921 = vmul.f32 %v847, %v885
    %v922 = vmul.f32 %v848, %v886
    %v923 = vmul.f32 %v849, %v887
    %v924 = vmul.f32 %v850, %v884
    %v925 = vmul.f32 %v851, %v885
    %v926 = vmul.f32 %v852, %v886
    %v927 = vmul.f32 %v853, %v887
    %v928 = vmul.f32 %v854, %v884
    %v929 = vmul.f32 %v855, %v885
    %v930 = vmul.f32 %v856, %v886
    %v931 = vmul.f32 %v857, %v887
    %v932 = vmul.f32 %v858, %v884
    %v933 = vmul.f32 %v859, %v885
    %v934 = vmul.f32 %v860, %v886
    %v935 = vmul.f32 %v861, %v887
    %v936 = vmul.f32 %v862, %v884
    %v937 = vmul.f32 %v863, %v885
    %v938 = vmul.f32 %v864, %v886
    %v939 = vmul.f32 %v865, %v887
    %v940 = vmul.f32 %v866, %v884
    %v941 = vmul.f32 %v867, %v885
    %v942 = vmul.f32 %v868, %v886
    %v943 = vmul.f32 %v869, %v887
    %v944 = vmul.f32 %v870, %v884
    %v945 = vmul.f32 %v871, %v885
    %v946 = vmul.f32 %v872, %v886
    %v947 = vmul.f32 %v873, %v887
    %v948 = vmul.f32 %v874, %v884
    %v949 = vmul.f32 %v875, %v885
    %v950 = vmul.f32 %v876, %v886
    %v951 = vmul.f32 %v877, %v887
    %v952 = vmul.f32 %v878, %v884
    %v953 = vmul.f32 %v879, %v885
    %v954 = vmul.f32 %v880, %v886
    %v955 = vmul.f32 %v881, %v887
    %v956 = vadd.f32 %v892, %v893
    %v957 = vadd.f32 %v956, %v894
    %v958 = vadd.f32 %v957, %v895
    %959 = vadd.xlane.f32.xlu0 %v958
    %v960 = vpop.xlane.xlu0 %959
    %v961 = vadd.f32 %v896, %v897
    %v962 = vadd.f32 %v961, %v898
    %v963 = vadd.f32 %v962, %v899
    %964 = vadd.xlane.f32.xlu0 %v963
    %v965 = vpop.xlane.xlu0 %964
    %v966 = vadd.f32 %v900, %v901
    %v967 = vadd.f32 %v966, %v902
    %v968 = vadd.f32 %v967, %v903
    %969 = vadd.xlane.f32.xlu0 %v968
    %v970 = vpop.xlane.xlu0 %969
    %v971 = vadd.f32 %v904, %v905
    %v972 = vadd.f32 %v971, %v906
    %v973 = vadd.f32 %v972, %v907
    %974 = vadd.xlane.f32.xlu0 %v973
    %v975 = vpop.xlane.xlu0 %974
    %v976 = vadd.f32 %v908, %v909
    %v977 = vadd.f32 %v976, %v910
    %v978 = vadd.f32 %v977, %v911
    %979 = vadd.xlane.f32.xlu0 %v978
    %v980 = vpop.xlane.xlu0 %979
    %v981 = vadd.f32 %v912, %v913
    %v982 = vadd.f32 %v981, %v914
    %v983 = vadd.f32 %v982, %v915
    %984 = vadd.xlane.f32.xlu0 %v983
    %v985 = vpop.xlane.xlu0 %984
    %v986 = vadd.f32 %v916, %v917
    %v987 = vadd.f32 %v986, %v918
    %v988 = vadd.f32 %v987, %v919
    %989 = vadd.xlane.f32.xlu0 %v988
    %v990 = vpop.xlane.xlu0 %989
    %v991 = vadd.f32 %v920, %v921
    %v992 = vadd.f32 %v991, %v922
    %v993 = vadd.f32 %v992, %v923
    %994 = vadd.xlane.f32.xlu0 %v993
    %v995 = vpop.xlane.xlu0 %994
    %v996 = vadd.f32 %v924, %v925
    %v997 = vadd.f32 %v996, %v926
    %v998 = vadd.f32 %v997, %v927
    %999 = vadd.xlane.f32.xlu0 %v998
    %v1000 = vpop.xlane.xlu0 %999
    %v1001 = vadd.f32 %v928, %v929
    %v1002 = vadd.f32 %v1001, %v930
    %v1003 = vadd.f32 %v1002, %v931
    %1004 = vadd.xlane.f32.xlu0 %v1003
    %v1005 = vpop.xlane.xlu0 %1004
    %v1006 = vadd.f32 %v932, %v933
    %v1007 = vadd.f32 %v1006, %v934
    %v1008 = vadd.f32 %v1007, %v935
    %1009 = vadd.xlane.f32.xlu0 %v1008
    %v1010 = vpop.xlane.xlu0 %1009
    %v1011 = vadd.f32 %v936, %v937
    %v1012 = vadd.f32 %v1011, %v938
    %v1013 = vadd.f32 %v1012, %v939
    %1014 = vadd.xlane.f32.xlu0 %v1013
    %v1015 = vpop.xlane.xlu0 %1014
    %v1016 = vadd.f32 %v940, %v941
    %v1017 = vadd.f32 %v1016, %v942
    %v1018 = vadd.f32 %v1017, %v943
    %1019 = vadd.xlane.f32.xlu0 %v1018
    %v1020 = vpop.xlane.xlu0 %1019
    %v1021 = vadd.f32 %v944, %v945
    %v1022 = vadd.f32 %v1021, %v946
    %v1023 = vadd.f32 %v1022, %v947
    %1024 = vadd.xlane.f32.xlu0 %v1023
    %v1025 = vpop.xlane.xlu0 %1024
    %v1026 = vadd.f32 %v948, %v949
    %v1027 = vadd.f32 %v1026, %v950
    %v1028 = vadd.f32 %v1027, %v951
    %1029 = vadd.xlane.f32.xlu0 %v1028
    %v1030 = vpop.xlane.xlu0 %1029
    %v1031 = vadd.f32 %v952, %v953
    %v1032 = vadd.f32 %v1031, %v954
    %v1033 = vadd.f32 %v1032, %v955
    %1034 = vadd.xlane.f32.xlu0 %v1033
    %v1035 = vpop.xlane.xlu0 %1034
    %v1036 = vld [vmem:[#allocation4] sm:$0x1]
    %v1038 = vperm.slane %v1036, 0
    %1039 = vset.pattern.permute.xlu0 0
    %1040 = vperm.xlu0 %1039, %v1038
    %v1041 = vpop.permute.xlu0 %1040
    %v1043 = vadd.f32 %v960, %v1041
    %v1044 = vadd.f32 %v965, %v1041
    %v1045 = vadd.f32 %v970, %v1041
    %v1046 = vadd.f32 %v975, %v1041
    %v1047 = vadd.f32 %v980, %v1041
    %v1048 = vadd.f32 %v985, %v1041
    %v1049 = vadd.f32 %v990, %v1041
    %v1050 = vadd.f32 %v995, %v1041
    %v1051 = vadd.f32 %v1000, %v1041
    %v1052 = vadd.f32 %v1005, %v1041
    %v1053 = vadd.f32 %v1010, %v1041
    %v1054 = vadd.f32 %v1015, %v1041
    %v1055 = vadd.f32 %v1020, %v1041
    %v1056 = vadd.f32 %v1025, %v1041
    %v1057 = vadd.f32 %v1030, %v1041
    %v1058 = vadd.f32 %v1035, %v1041
    %v1075 = vlaneseq
    %v1076 = vand.u32 %v1075, 127
    %v1077 = vperm.slane %v1043, %v1076
    %v1078 = vadd.s32 %v1076, 4294967288
    %v1079 = vperm.slane %v1044, %v1078
    %vm1080 = vcmask 130112
    %v1081 = vsel %vm1080, %v1079, %v1077
    %v1082 = vadd.s32 %v1076, 4294967280
    %v1083 = vperm.slane %v1045, %v1082
    %vm1084 = vcmask 195712
    %v1085 = vsel %vm1084, %v1083, %v1081
    %v1086 = vadd.s32 %v1076, 4294967272
    %v1087 = vperm.slane %v1046, %v1086
    %vm1088 = vcmask 261312
    %v1089 = vsel %vm1088, %v1087, %v1085
    %v1090 = vadd.s32 %v1076, 4294967264
    %v1091 = vperm.slane %v1047, %v1090
    %vm1092 = vcmask 326912
    %v1093 = vsel %vm1092, %v1091, %v1089
    %v1094 = vadd.s32 %v1076, 4294967256
    %v1095 = vperm.slane %v1048, %v1094
    %vm1096 = vcmask 392512
    %v1097 = vsel %vm1096, %v1095, %v1093
    %v1098 = vadd.s32 %v1076, 4294967248
    %v1099 = vperm.slane %v1049, %v1098
    %vm1100 = vcmask 458112
    %v1101 = vsel %vm1100, %v1099, %v1097
    %v1102 = vadd.s32 %v1076, 4294967240
    %v1103 = vperm.slane %v1050, %v1102
    %vm1104 = vcmask 523712
    %v1105 = vsel %vm1104, %v1103, %v1101
    %v1106 = vperm.slane %v1051, %v1076
    %v1107 = vperm.slane %v1052, %v1078
    %v1108 = vsel %vm1080, %v1107, %v1106
    %v1109 = vperm.slane %v1053, %v1082
    %v1110 = vsel %vm1084, %v1109, %v1108
    %v1111 = vperm.slane %v1054, %v1086
    %v1112 = vsel %vm1088, %v1111, %v1110
    %v1113 = vperm.slane %v1055, %v1090
    %v1114 = vsel %vm1092, %v1113, %v1112
    %v1115 = vperm.slane %v1056, %v1094
    %v1116 = vsel %vm1096, %v1115, %v1114
    %v1117 = vperm.slane %v1057, %v1098
    %v1118 = vsel %vm1100, %v1117, %v1116
    %v1119 = vperm.slane %v1058, %v1102
    %v1120 = vsel %vm1104, %v1119, %v1118
    %vm1123 = vcmask 516096
    %1124 = vst.msk [vmem:[#allocation7] sm:$0x1] %vm1123, %v1105
    %1125 = vst.msk [vmem:[#allocation7 + $0x1] sm:$0x1] %vm1123, %v1120
    // Predicated region
    $region46: #{_lambda_.3} parent=1 // pred_check
      _
    $region47: #{_lambda_.3} parent=1 // pred_check_branch
      %1127 = sbr.rel (0) target = $region49
    $region48: #{_lambda_.3} parent=1 // pred_region
      %1129 = vsyncadd [#allocation6], 0
      %s1130 = sshll.u32 [#allocation5], 4
      %s1131 = int_to_ptr.vmem [resolvable:$true] %s1130
      %s1132 = sshll.u32 %s11, 4
      %s1133 = int_to_ptr.hbm [resolvable:$true] %s1132
      %1138 = dma.vmem_to_hbm [thread:$0]  %s1131, 32, %s1133, [#allocation6], 16, 16, 1
    $region49: #{_lambda_.3} parent=1 // pred_fallthru
      _
    // Predicated region
    $region50: #{_lambda_.3} parent=1 // pred_check
      _
    $region51: #{_lambda_.3} parent=1 // pred_check_branch
      %1140 = sbr.rel (0) target = $region53
    $region52: #{_lambda_.3} parent=1 // pred_region
      %1142 = vsyncadd [#allocation8], 0
      %s1143 = sshll.u32 [#allocation7], 4
      %s1144 = int_to_ptr.vmem [resolvable:$true] %s1143
      %s1145 = sshll.u32 %s12, 4
      %s1146 = int_to_ptr.hbm [resolvable:$true] %s1145
      %1151 = dma.vmem_to_hbm [thread:$0]  %s1144, 32, %s1146, [#allocation8], 16, 16, 1
    $region53: #{_lambda_.3} parent=1 // pred_fallthru
      _
    // Predicated region
    $region54: #{_lambda_.3} parent=1 // pred_check
      _
    $region55: #{_lambda_.3} parent=1 // pred_check_branch
      %1153 = sbr.rel (0) target = $region57
    $region56: #{_lambda_.3} parent=1 // pred_region
      %1155 = dma.done [#allocation6], 32
    $region57: #{_lambda_.3} parent=1 // pred_fallthru
      _
    // Predicated region
    $region58: #{_lambda_.3} parent=1 // pred_check
      _
    $region59: #{_lambda_.3} parent=1 // pred_check_branch
      %1157 = sbr.rel (0) target = $region61
    $region60: #{_lambda_.3} parent=1 // pred_region
      %1159 = dma.done [#allocation8], 32
    $region61: #{_lambda_.3} parent=1 // pred_fallthru
      _
    %1160 = vsyncpa [#allocation6], 1
    %1161 = vsyncpa [#allocation8], 1

</llo_original>
